<compile_context>
chip_gen: v6e
topology: v6e:2x2x1
jax: 0.10.0
libtpu: 0.0.40
codegen_flags: <defaults>
</compile_context>

<pallas_src>
import math
import functools

import jax
import jax.numpy as jnp
from jax import lax
from jax.experimental import pallas as pl
from jax.experimental.pallas import tpu as pltpu


def _layer_norm(v, gamma, beta, eps=1e-5):
    mu = jnp.mean(v, axis=-1, keepdims=True)
    var = jnp.mean((v - mu) ** 2, axis=-1, keepdims=True)
    return (v - mu) * lax.rsqrt(var + eps) * gamma + beta


def encoder_block_kernel(
    x_ref, maskb_ref,
    wqkv_ref, bqkv_ref, wo_ref,
    w1_ref, b1_ref, w2_ref,
    pe_ref,          # packed (6, E): [bo, b2, ln1_g, ln1_b, ln2_g, ln2_b]
    out_ref,
    *, num_heads: int,
):
    # One grid step handles one batch element.
    x = x_ref[0]                 # (S, E) f32
    mask_bias = maskb_ref[0]     # (1, S) additive bias: 0 for valid, -1e9 for pad

    S, E = x.shape
    d = E // num_heads

    pe = pe_ref[...]             # (6, E) f32
    bo, b2 = pe[0:1, :], pe[1:2, :]
    ln1_g, ln1_b = pe[2:3, :], pe[3:4, :]
    ln2_g, ln2_b = pe[4:5, :], pe[5:6, :]

    x_bf = x.astype(jnp.bfloat16)

    # ---- Fused Q/K/V projection (single MXU matmul, bf16 in / f32 accum) ----
    # NOTE: the 1/sqrt(d) attention scale is already folded into wq/bq host-side.
    qkv = jnp.dot(x_bf, wqkv_ref[...], preferred_element_type=jnp.float32)
    qkv = (qkv + bqkv_ref[...]).astype(jnp.bfloat16)    # (S, 3E) bf16, one cast

    # ---- Multi-head self-attention --------------------------------------
    # Head loop is fully unrolled; only 2-D MXU matmuls, no explicit transposes,
    # no lane-axis concatenate (output projection accumulated per head).
    dn_qkT = (((1,), (1,)), ((), ()))                   # q @ k^T without explicit .T
    attn_out = None
    for h in range(num_heads):
        qh = qkv[:, h * d:(h + 1) * d]                          # (S, d) bf16 (pre-scaled)
        kh = qkv[:, E + h * d:E + (h + 1) * d]                  # (S, d) bf16
        vh = qkv[:, 2 * E + h * d:2 * E + (h + 1) * d]          # (S, d) bf16

        logits = lax.dot_general(qh, kh, dn_qkT,
                                 preferred_element_type=jnp.float32)           # (S, S)
        logits = logits + mask_bias                  # broadcast (1,S) over query rows
        m = jnp.max(logits, axis=-1, keepdims=True)
        p = jnp.exp(logits - m)
        p = p * pl.reciprocal(jnp.sum(p, axis=-1, keepdims=True), approx=True)

        ctx_h = jnp.dot(p.astype(jnp.bfloat16), vh,
                        preferred_element_type=jnp.float32)                     # (S, d)
        part = jnp.dot(ctx_h.astype(jnp.bfloat16), wo_ref[h],
                       preferred_element_type=jnp.float32)                      # (S, E)
        attn_out = part if attn_out is None else attn_out + part
    attn_out = attn_out + bo

    # dropout1 -> identity (eval)
    x1 = _layer_norm(x + attn_out, ln1_g, ln1_b)

    # ---- Feed-forward -----------------------------------------------------
    h1 = jnp.dot(x1.astype(jnp.bfloat16), w1_ref[...],
                 preferred_element_type=jnp.float32) + b1_ref[...]
    h1 = jnp.maximum(h1, 0.0)
    ff = jnp.dot(h1.astype(jnp.bfloat16), w2_ref[...],
                 preferred_element_type=jnp.float32) + b2

    # dropout2 -> identity (eval)
    x2 = _layer_norm(x1 + ff, ln2_g, ln2_b)

    out_ref[0] = x2.astype(out_ref.dtype)


def encoder_block(x, src_padding_mask, params, num_heads):
    """x: (N, S, E) float32; src_padding_mask: (N, S) bool (True = keep)."""
    N, S, E = x.shape
    F = params["w1"].shape[1]
    assert E % num_heads == 0
    d = E // num_heads
    scale = 1.0 / math.sqrt(d)

    # Additive attention bias, shaped (N, 1, S) so it broadcasts over query rows.
    mask_bias = jnp.where(src_padding_mask[:, None, :], 0.0, -1e9).astype(jnp.float32)

    # Host-side packing / dtype prep (free relative to the kernel).
    # Fold the 1/sqrt(d) attention scale into the query projection so the kernel
    # never multiplies an (S,S) logits tile by a scalar.
    w_qkv = jnp.concatenate(
        [params["wq"] * scale, params["wk"], params["wv"]], axis=1
    ).astype(jnp.bfloat16)                                                       # (E, 3E)
    b_qkv = jnp.concatenate(
        [params["bq"] * scale, params["bk"], params["bv"]], axis=1
    ).astype(jnp.float32)                                                        # (1, 3E)
    wo_r = params["wo"].reshape(num_heads, d, E).astype(jnp.bfloat16)            # (H, d, E)
    w1 = params["w1"].astype(jnp.bfloat16)
    w2 = params["w2"].astype(jnp.bfloat16)
    packed_e = jnp.concatenate(
        [params["bo"], params["b2"], params["ln1_g"], params["ln1_b"],
         params["ln2_g"], params["ln2_b"]], axis=0).astype(jnp.float32)          # (6, E)

    operands = (x, mask_bias, w_qkv, b_qkv, wo_r, w1,
                params["b1"].astype(jnp.float32), w2, packed_e)

    def full(shp):
        return pl.BlockSpec(shp, lambda b: (0,) * len(shp))

    in_specs = [
        pl.BlockSpec((1, S, E), lambda b: (b, 0, 0)),   # x
        pl.BlockSpec((1, 1, S), lambda b: (b, 0, 0)),   # mask bias
        full((E, 3 * E)),                               # fused qkv weight (bf16, q pre-scaled)
        full((1, 3 * E)),                               # fused qkv bias (f32, q pre-scaled)
        full((num_heads, d, E)),                        # output projection (bf16)
        full((E, F)),                                   # w1 (bf16)
        full((1, F)),                                   # b1 (f32)
        full((F, E)),                                   # w2 (bf16)
        full((6, E)),                                   # packed biases / LN params (f32)
    ]

    flops = N * (8 * S * E * E + 4 * S * S * E + 4 * S * E * F)
    transcendentals = N * (num_heads * S * S + 2 * S)
    bytes_accessed = sum(int(a.size) * a.dtype.itemsize for a in operands) + N * S * E * 4
    vmem_limit = int(min(48 * 2**20, max(32 * 2**20, 2 * bytes_accessed)))

    kernel = functools.partial(encoder_block_kernel, num_heads=num_heads)

    return pl.pallas_call(
        kernel,
        out_shape=jax.ShapeDtypeStruct((N, S, E), jnp.float32),
        grid_spec=pltpu.PrefetchScalarGridSpec(
            num_scalar_prefetch=0,
            grid=(N,),
            in_specs=in_specs,
            out_specs=pl.BlockSpec((1, S, E), lambda b: (b, 0, 0)),
        ),
        compiler_params=pltpu.CompilerParams(
            dimension_semantics=("parallel",),
            vmem_limit_bytes=vmem_limit,
        ),
        cost_estimate=pl.CostEstimate(
            flops=flops,
            transcendentals=transcendentals,
            bytes_accessed=bytes_accessed,
        ),
    )(*operands)


def _xavier_uniform(key, fan_in, fan_out):
    limit = math.sqrt(6.0 / (fan_in + fan_out))
    return jax.random.uniform(key, (fan_in, fan_out), jnp.float32, -limit, limit)


def init_params(key, hidden_dim, ff_dim):
    keys = jax.random.split(key, 6)
    E, F = hidden_dim, ff_dim
    return {
        "wq": _xavier_uniform(keys[0], E, E), "bq": jnp.zeros((1, E), jnp.float32),
        "wk": _xavier_uniform(keys[1], E, E), "bk": jnp.zeros((1, E), jnp.float32),
        "wv": _xavier_uniform(keys[2], E, E), "bv": jnp.zeros((1, E), jnp.float32),
        "wo": _xavier_uniform(keys[3], E, E), "bo": jnp.zeros((1, E), jnp.float32),
        "w1": _xavier_uniform(keys[4], E, F), "b1": jnp.zeros((1, F), jnp.float32),
        "w2": _xavier_uniform(keys[5], F, E), "b2": jnp.zeros((1, E), jnp.float32),
        "ln1_g": jnp.ones((1, E), jnp.float32), "ln1_b": jnp.zeros((1, E), jnp.float32),
        "ln2_g": jnp.ones((1, E), jnp.float32), "ln2_b": jnp.zeros((1, E), jnp.float32),
    }


if __name__ == "__main__":
    N, S, E = 2, 8, 32
    ff_dim, num_heads = 64, 4

    root = jax.random.PRNGKey(0)
    k_x, k_p = jax.random.split(root)

    x = jax.random.normal(k_x, (N, S, E), jnp.float32)
    # True = real token; last two positions of batch element 1 are padding.
    src_padding_mask = jnp.ones((N, S), dtype=bool).at[1, -2:].set(False)

    params = init_params(k_p, E, ff_dim)

    out = encoder_block(x, src_padding_mask, params, num_heads)
    out = jax.block_until_ready(out)

    assert out.shape == (N, S, E)
    assert bool(jnp.all(jnp.isfinite(out)))
    print("KERNEL_OK")
</pallas_src>

<mosaic_0001>
module attributes {stable_mosaic.version = 11 : i64} {
  func.func @encoder_block_kernel(%arg0: i32, %arg1: memref<1x8x32xf32, #tpu.memory_space<vmem>>, %arg2: memref<1x1x8xf32, #tpu.memory_space<vmem>>, %arg3: memref<32x96xbf16, #tpu.memory_space<vmem>>, %arg4: memref<1x96xf32, #tpu.memory_space<vmem>>, %arg5: memref<4x8x32xbf16, #tpu.memory_space<vmem>>, %arg6: memref<32x64xbf16, #tpu.memory_space<vmem>>, %arg7: memref<1x64xf32, #tpu.memory_space<vmem>>, %arg8: memref<64x32xbf16, #tpu.memory_space<vmem>>, %arg9: memref<6x32xf32, #tpu.memory_space<vmem>>, %arg10: memref<1x8x32xf32, #tpu.memory_space<vmem>>) attributes {dimension_semantics = [#tpu.dimension_semantics<parallel>], iteration_bounds = array<i64: 2>, scalar_prefetch = 0 : i64, scratch_operands = 0 : i64, tpu.core_type = #tpu.core_type<tc>, window_params = [{transform_indices = @transform_0, window_bounds = array<i64: 1, 8, 32>}, {transform_indices = @transform_1, window_bounds = array<i64: 1, 1, 8>}, {pipeline_mode = #tpu.pipeline_mode<synchronous>, transform_indices = @transform_2, window_bounds = array<i64: 32, 96>}, {pipeline_mode = #tpu.pipeline_mode<synchronous>, transform_indices = @transform_3, window_bounds = array<i64: 1, 96>}, {pipeline_mode = #tpu.pipeline_mode<synchronous>, transform_indices = @transform_4, window_bounds = array<i64: 4, 8, 32>}, {pipeline_mode = #tpu.pipeline_mode<synchronous>, transform_indices = @transform_5, window_bounds = array<i64: 32, 64>}, {pipeline_mode = #tpu.pipeline_mode<synchronous>, transform_indices = @transform_6, window_bounds = array<i64: 1, 64>}, {pipeline_mode = #tpu.pipeline_mode<synchronous>, transform_indices = @transform_7, window_bounds = array<i64: 64, 32>}, {pipeline_mode = #tpu.pipeline_mode<synchronous>, transform_indices = @transform_8, window_bounds = array<i64: 6, 32>}, {transform_indices = @transform_9, window_bounds = array<i64: 1, 8, 32>}]} {
    %c0 = arith.constant 0 : index
    %c0_0 = arith.constant 0 : index
    %c0_1 = arith.constant 0 : index
    %0 = vector.load %arg1[%c0, %c0_0, %c0_1] : memref<1x8x32xf32, #tpu.memory_space<vmem>>, vector<1x8x32xf32>
    %1 = vector.shape_cast %0 : vector<1x8x32xf32> to vector<8x32xf32>
    %c0_2 = arith.constant 0 : index
    %c0_3 = arith.constant 0 : index
    %c0_4 = arith.constant 0 : index
    %2 = vector.load %arg2[%c0_2, %c0_3, %c0_4] : memref<1x1x8xf32, #tpu.memory_space<vmem>>, vector<1x1x8xf32>
    %3 = vector.shape_cast %2 : vector<1x1x8xf32> to vector<1x8xf32>
    %c0_5 = arith.constant 0 : index
    %c0_6 = arith.constant 0 : index
    %4 = vector.load %arg9[%c0_5, %c0_6] : memref<6x32xf32, #tpu.memory_space<vmem>>, vector<6x32xf32>
    %5 = vector.extract_strided_slice %4 {offsets = [0, 0], sizes = [1, 32], strides = [1, 1]} : vector<6x32xf32> to vector<1x32xf32>
    %6 = vector.extract_strided_slice %4 {offsets = [1, 0], sizes = [1, 32], strides = [1, 1]} : vector<6x32xf32> to vector<1x32xf32>
    %7 = vector.extract_strided_slice %4 {offsets = [2, 0], sizes = [1, 32], strides = [1, 1]} : vector<6x32xf32> to vector<1x32xf32>
    %8 = vector.extract_strided_slice %4 {offsets = [3, 0], sizes = [1, 32], strides = [1, 1]} : vector<6x32xf32> to vector<1x32xf32>
    %9 = vector.extract_strided_slice %4 {offsets = [4, 0], sizes = [1, 32], strides = [1, 1]} : vector<6x32xf32> to vector<1x32xf32>
    %10 = vector.extract_strided_slice %4 {offsets = [5, 0], sizes = [1, 32], strides = [1, 1]} : vector<6x32xf32> to vector<1x32xf32>
    %11 = arith.truncf %1 : vector<8x32xf32> to vector<8x32xbf16>
    %c0_7 = arith.constant 0 : index
    %c0_8 = arith.constant 0 : index
    %12 = vector.load %arg3[%c0_7, %c0_8] : memref<32x96xbf16, #tpu.memory_space<vmem>>, vector<32x96xbf16>
    %cst = arith.constant dense<0.000000e+00> : vector<8x96xf32>
    %13 = tpu.matmul %11, %12, %cst {dimension_numbers = #tpu.dot_dimension_numbers<[1], [0], [0], [1], [0, 0, 1, 1], [], []>} : vector<8x32xbf16>, vector<32x96xbf16>, vector<8x96xf32> -> vector<8x96xf32>
    %c0_9 = arith.constant 0 : index
    %c0_10 = arith.constant 0 : index
    %14 = vector.load %arg4[%c0_9, %c0_10] : memref<1x96xf32, #tpu.memory_space<vmem>>, vector<1x96xf32>
    %15 = vector.broadcast %14 : vector<1x96xf32> to vector<8x96xf32>
    %16 = arith.addf %13, %15 : vector<8x96xf32>
    %17 = arith.truncf %16 : vector<8x96xf32> to vector<8x96xbf16>
    %18 = vector.extract_strided_slice %17 {offsets = [0, 0], sizes = [8, 8], strides = [1, 1]} : vector<8x96xbf16> to vector<8x8xbf16>
    %19 = vector.extract_strided_slice %17 {offsets = [0, 32], sizes = [8, 8], strides = [1, 1]} : vector<8x96xbf16> to vector<8x8xbf16>
    %20 = vector.extract_strided_slice %17 {offsets = [0, 64], sizes = [8, 8], strides = [1, 1]} : vector<8x96xbf16> to vector<8x8xbf16>
    %cst_11 = arith.constant dense<0.000000e+00> : vector<8x8xf32>
    %21 = tpu.matmul %18, %19, %cst_11 {dimension_numbers = #tpu.dot_dimension_numbers<[1], [1], [0], [0], [0, 0, 1, 0], [], []>} : vector<8x8xbf16>, vector<8x8xbf16>, vector<8x8xf32> -> vector<8x8xf32>
    %22 = vector.broadcast %3 : vector<1x8xf32> to vector<8x8xf32>
    %23 = arith.addf %21, %22 : vector<8x8xf32>
    %cst_12 = arith.constant dense<0xFF800000> : vector<8xf32>
    %24 = vector.multi_reduction <maximumf>, %23, %cst_12 [1] : vector<8x8xf32> to vector<8xf32>
    %25 = vector.shape_cast %24 : vector<8xf32> to vector<8x1xf32>
    %26 = vector.broadcast %25 : vector<8x1xf32> to vector<8x8xf32>
    %27 = arith.subf %23, %26 : vector<8x8xf32>
    %28 = math.exp %27 : vector<8x8xf32>
    %cst_13 = arith.constant dense<0.000000e+00> : vector<8xf32>
    %29 = vector.multi_reduction <add>, %28, %cst_13 [1] : vector<8x8xf32> to vector<8xf32>
    %30 = vector.shape_cast %29 : vector<8xf32> to vector<8x1xf32>
    %31 = tpu.reciprocal %30 {approx = true} : vector<8x1xf32> -> vector<8x1xf32>
    %32 = vector.broadcast %31 : vector<8x1xf32> to vector<8x8xf32>
    %33 = arith.mulf %28, %32 : vector<8x8xf32>
    %34 = arith.truncf %33 : vector<8x8xf32> to vector<8x8xbf16>
    %cst_14 = arith.constant dense<0.000000e+00> : vector<8x8xf32>
    %35 = tpu.matmul %34, %20, %cst_14 {dimension_numbers = #tpu.dot_dimension_numbers<[1], [0], [0], [1], [0, 0, 1, 1], [], []>} : vector<8x8xbf16>, vector<8x8xbf16>, vector<8x8xf32> -> vector<8x8xf32>
    %36 = arith.truncf %35 : vector<8x8xf32> to vector<8x8xbf16>
    %c0_15 = arith.constant 0 : index
    %c0_16 = arith.constant 0 : index
    %c0_17 = arith.constant 0 : index
    %37 = vector.load %arg5[%c0_15, %c0_16, %c0_17] : memref<4x8x32xbf16, #tpu.memory_space<vmem>>, vector<1x8x32xbf16>
    %38 = vector.shape_cast %37 : vector<1x8x32xbf16> to vector<8x32xbf16>
    %cst_18 = arith.constant dense<0.000000e+00> : vector<8x32xf32>
    %39 = tpu.matmul %36, %38, %cst_18 {dimension_numbers = #tpu.dot_dimension_numbers<[1], [0], [0], [1], [0, 0, 1, 1], [], []>} : vector<8x8xbf16>, vector<8x32xbf16>, vector<8x32xf32> -> vector<8x32xf32>
    %40 = vector.extract_strided_slice %17 {offsets = [0, 8], sizes = [8, 8], strides = [1, 1]} : vector<8x96xbf16> to vector<8x8xbf16>
    %41 = vector.extract_strided_slice %17 {offsets = [0, 40], sizes = [8, 8], strides = [1, 1]} : vector<8x96xbf16> to vector<8x8xbf16>
    %42 = vector.extract_strided_slice %17 {offsets = [0, 72], sizes = [8, 8], strides = [1, 1]} : vector<8x96xbf16> to vector<8x8xbf16>
    %cst_19 = arith.constant dense<0.000000e+00> : vector<8x8xf32>
    %43 = tpu.matmul %40, %41, %cst_19 {dimension_numbers = #tpu.dot_dimension_numbers<[1], [1], [0], [0], [0, 0, 1, 0], [], []>} : vector<8x8xbf16>, vector<8x8xbf16>, vector<8x8xf32> -> vector<8x8xf32>
    %44 = vector.broadcast %3 : vector<1x8xf32> to vector<8x8xf32>
    %45 = arith.addf %43, %44 : vector<8x8xf32>
    %cst_20 = arith.constant dense<0xFF800000> : vector<8xf32>
    %46 = vector.multi_reduction <maximumf>, %45, %cst_20 [1] : vector<8x8xf32> to vector<8xf32>
    %47 = vector.shape_cast %46 : vector<8xf32> to vector<8x1xf32>
    %48 = vector.broadcast %47 : vector<8x1xf32> to vector<8x8xf32>
    %49 = arith.subf %45, %48 : vector<8x8xf32>
    %50 = math.exp %49 : vector<8x8xf32>
    %cst_21 = arith.constant dense<0.000000e+00> : vector<8xf32>
    %51 = vector.multi_reduction <add>, %50, %cst_21 [1] : vector<8x8xf32> to vector<8xf32>
    %52 = vector.shape_cast %51 : vector<8xf32> to vector<8x1xf32>
    %53 = tpu.reciprocal %52 {approx = true} : vector<8x1xf32> -> vector<8x1xf32>
    %54 = vector.broadcast %53 : vector<8x1xf32> to vector<8x8xf32>
    %55 = arith.mulf %50, %54 : vector<8x8xf32>
    %56 = arith.truncf %55 : vector<8x8xf32> to vector<8x8xbf16>
    %cst_22 = arith.constant dense<0.000000e+00> : vector<8x8xf32>
    %57 = tpu.matmul %56, %42, %cst_22 {dimension_numbers = #tpu.dot_dimension_numbers<[1], [0], [0], [1], [0, 0, 1, 1], [], []>} : vector<8x8xbf16>, vector<8x8xbf16>, vector<8x8xf32> -> vector<8x8xf32>
    %58 = arith.truncf %57 : vector<8x8xf32> to vector<8x8xbf16>
    %c1 = arith.constant 1 : index
    %c0_23 = arith.constant 0 : index
    %c0_24 = arith.constant 0 : index
    %59 = vector.load %arg5[%c1, %c0_23, %c0_24] : memref<4x8x32xbf16, #tpu.memory_space<vmem>>, vector<1x8x32xbf16>
    %60 = vector.shape_cast %59 : vector<1x8x32xbf16> to vector<8x32xbf16>
    %cst_25 = arith.constant dense<0.000000e+00> : vector<8x32xf32>
    %61 = tpu.matmul %58, %60, %cst_25 {dimension_numbers = #tpu.dot_dimension_numbers<[1], [0], [0], [1], [0, 0, 1, 1], [], []>} : vector<8x8xbf16>, vector<8x32xbf16>, vector<8x32xf32> -> vector<8x32xf32>
    %62 = arith.addf %39, %61 : vector<8x32xf32>
    %63 = vector.extract_strided_slice %17 {offsets = [0, 16], sizes = [8, 8], strides = [1, 1]} : vector<8x96xbf16> to vector<8x8xbf16>
    %64 = vector.extract_strided_slice %17 {offsets = [0, 48], sizes = [8, 8], strides = [1, 1]} : vector<8x96xbf16> to vector<8x8xbf16>
    %65 = vector.extract_strided_slice %17 {offsets = [0, 80], sizes = [8, 8], strides = [1, 1]} : vector<8x96xbf16> to vector<8x8xbf16>
    %cst_26 = arith.constant dense<0.000000e+00> : vector<8x8xf32>
    %66 = tpu.matmul %63, %64, %cst_26 {dimension_numbers = #tpu.dot_dimension_numbers<[1], [1], [0], [0], [0, 0, 1, 0], [], []>} : vector<8x8xbf16>, vector<8x8xbf16>, vector<8x8xf32> -> vector<8x8xf32>
    %67 = vector.broadcast %3 : vector<1x8xf32> to vector<8x8xf32>
    %68 = arith.addf %66, %67 : vector<8x8xf32>
    %cst_27 = arith.constant dense<0xFF800000> : vector<8xf32>
    %69 = vector.multi_reduction <maximumf>, %68, %cst_27 [1] : vector<8x8xf32> to vector<8xf32>
    %70 = vector.shape_cast %69 : vector<8xf32> to vector<8x1xf32>
    %71 = vector.broadcast %70 : vector<8x1xf32> to vector<8x8xf32>
    %72 = arith.subf %68, %71 : vector<8x8xf32>
    %73 = math.exp %72 : vector<8x8xf32>
    %cst_28 = arith.constant dense<0.000000e+00> : vector<8xf32>
    %74 = vector.multi_reduction <add>, %73, %cst_28 [1] : vector<8x8xf32> to vector<8xf32>
    %75 = vector.shape_cast %74 : vector<8xf32> to vector<8x1xf32>
    %76 = tpu.reciprocal %75 {approx = true} : vector<8x1xf32> -> vector<8x1xf32>
    %77 = vector.broadcast %76 : vector<8x1xf32> to vector<8x8xf32>
    %78 = arith.mulf %73, %77 : vector<8x8xf32>
    %79 = arith.truncf %78 : vector<8x8xf32> to vector<8x8xbf16>
    %cst_29 = arith.constant dense<0.000000e+00> : vector<8x8xf32>
    %80 = tpu.matmul %79, %65, %cst_29 {dimension_numbers = #tpu.dot_dimension_numbers<[1], [0], [0], [1], [0, 0, 1, 1], [], []>} : vector<8x8xbf16>, vector<8x8xbf16>, vector<8x8xf32> -> vector<8x8xf32>
    %81 = arith.truncf %80 : vector<8x8xf32> to vector<8x8xbf16>
    %c2 = arith.constant 2 : index
    %c0_30 = arith.constant 0 : index
    %c0_31 = arith.constant 0 : index
    %82 = vector.load %arg5[%c2, %c0_30, %c0_31] : memref<4x8x32xbf16, #tpu.memory_space<vmem>>, vector<1x8x32xbf16>
    %83 = vector.shape_cast %82 : vector<1x8x32xbf16> to vector<8x32xbf16>
    %cst_32 = arith.constant dense<0.000000e+00> : vector<8x32xf32>
    %84 = tpu.matmul %81, %83, %cst_32 {dimension_numbers = #tpu.dot_dimension_numbers<[1], [0], [0], [1], [0, 0, 1, 1], [], []>} : vector<8x8xbf16>, vector<8x32xbf16>, vector<8x32xf32> -> vector<8x32xf32>
    %85 = arith.addf %62, %84 : vector<8x32xf32>
    %86 = vector.extract_strided_slice %17 {offsets = [0, 24], sizes = [8, 8], strides = [1, 1]} : vector<8x96xbf16> to vector<8x8xbf16>
    %87 = vector.extract_strided_slice %17 {offsets = [0, 56], sizes = [8, 8], strides = [1, 1]} : vector<8x96xbf16> to vector<8x8xbf16>
    %88 = vector.extract_strided_slice %17 {offsets = [0, 88], sizes = [8, 8], strides = [1, 1]} : vector<8x96xbf16> to vector<8x8xbf16>
    %cst_33 = arith.constant dense<0.000000e+00> : vector<8x8xf32>
    %89 = tpu.matmul %86, %87, %cst_33 {dimension_numbers = #tpu.dot_dimension_numbers<[1], [1], [0], [0], [0, 0, 1, 0], [], []>} : vector<8x8xbf16>, vector<8x8xbf16>, vector<8x8xf32> -> vector<8x8xf32>
    %90 = vector.broadcast %3 : vector<1x8xf32> to vector<8x8xf32>
    %91 = arith.addf %89, %90 : vector<8x8xf32>
    %cst_34 = arith.constant dense<0xFF800000> : vector<8xf32>
    %92 = vector.multi_reduction <maximumf>, %91, %cst_34 [1] : vector<8x8xf32> to vector<8xf32>
    %93 = vector.shape_cast %92 : vector<8xf32> to vector<8x1xf32>
    %94 = vector.broadcast %93 : vector<8x1xf32> to vector<8x8xf32>
    %95 = arith.subf %91, %94 : vector<8x8xf32>
    %96 = math.exp %95 : vector<8x8xf32>
    %cst_35 = arith.constant dense<0.000000e+00> : vector<8xf32>
    %97 = vector.multi_reduction <add>, %96, %cst_35 [1] : vector<8x8xf32> to vector<8xf32>
    %98 = vector.shape_cast %97 : vector<8xf32> to vector<8x1xf32>
    %99 = tpu.reciprocal %98 {approx = true} : vector<8x1xf32> -> vector<8x1xf32>
    %100 = vector.broadcast %99 : vector<8x1xf32> to vector<8x8xf32>
    %101 = arith.mulf %96, %100 : vector<8x8xf32>
    %102 = arith.truncf %101 : vector<8x8xf32> to vector<8x8xbf16>
    %cst_36 = arith.constant dense<0.000000e+00> : vector<8x8xf32>
    %103 = tpu.matmul %102, %88, %cst_36 {dimension_numbers = #tpu.dot_dimension_numbers<[1], [0], [0], [1], [0, 0, 1, 1], [], []>} : vector<8x8xbf16>, vector<8x8xbf16>, vector<8x8xf32> -> vector<8x8xf32>
    %104 = arith.truncf %103 : vector<8x8xf32> to vector<8x8xbf16>
    %c3 = arith.constant 3 : index
    %c0_37 = arith.constant 0 : index
    %c0_38 = arith.constant 0 : index
    %105 = vector.load %arg5[%c3, %c0_37, %c0_38] : memref<4x8x32xbf16, #tpu.memory_space<vmem>>, vector<1x8x32xbf16>
    %106 = vector.shape_cast %105 : vector<1x8x32xbf16> to vector<8x32xbf16>
    %cst_39 = arith.constant dense<0.000000e+00> : vector<8x32xf32>
    %107 = tpu.matmul %104, %106, %cst_39 {dimension_numbers = #tpu.dot_dimension_numbers<[1], [0], [0], [1], [0, 0, 1, 1], [], []>} : vector<8x8xbf16>, vector<8x32xbf16>, vector<8x32xf32> -> vector<8x32xf32>
    %108 = arith.addf %85, %107 : vector<8x32xf32>
    %109 = vector.broadcast %5 : vector<1x32xf32> to vector<8x32xf32>
    %110 = arith.addf %108, %109 : vector<8x32xf32>
    %111 = arith.addf %1, %110 : vector<8x32xf32>
    %cst_40 = arith.constant dense<0.000000e+00> : vector<8xf32>
    %112 = vector.multi_reduction <add>, %111, %cst_40 [1] : vector<8x32xf32> to vector<8xf32>
    %113 = vector.shape_cast %112 : vector<8xf32> to vector<8x1xf32>
    %cst_41 = arith.constant 3.200000e+01 : f32
    %114 = vector.broadcast %cst_41 : f32 to vector<8x1xf32>
    %115 = arith.divf %113, %114 : vector<8x1xf32>
    %116 = vector.broadcast %115 : vector<8x1xf32> to vector<8x32xf32>
    %117 = arith.subf %111, %116 : vector<8x32xf32>
    %118 = arith.mulf %117, %117 : vector<8x32xf32>
    %cst_42 = arith.constant dense<0.000000e+00> : vector<8xf32>
    %119 = vector.multi_reduction <add>, %118, %cst_42 [1] : vector<8x32xf32> to vector<8xf32>
    %120 = vector.shape_cast %119 : vector<8xf32> to vector<8x1xf32>
    %cst_43 = arith.constant 3.200000e+01 : f32
    %121 = vector.broadcast %cst_43 : f32 to vector<8x1xf32>
    %122 = arith.divf %120, %121 : vector<8x1xf32>
    %123 = vector.broadcast %115 : vector<8x1xf32> to vector<8x32xf32>
    %124 = arith.subf %111, %123 : vector<8x32xf32>
    %cst_44 = arith.constant 9.99999974E-6 : f32
    %125 = vector.broadcast %cst_44 : f32 to vector<8x1xf32>
    %126 = arith.addf %122, %125 : vector<8x1xf32>
    %127 = math.rsqrt %126 : vector<8x1xf32>
    %128 = vector.broadcast %127 : vector<8x1xf32> to vector<8x32xf32>
    %129 = arith.mulf %124, %128 : vector<8x32xf32>
    %130 = vector.broadcast %7 : vector<1x32xf32> to vector<8x32xf32>
    %131 = arith.mulf %129, %130 : vector<8x32xf32>
    %132 = vector.broadcast %8 : vector<1x32xf32> to vector<8x32xf32>
    %133 = arith.addf %131, %132 : vector<8x32xf32>
    %134 = arith.truncf %133 : vector<8x32xf32> to vector<8x32xbf16>
    %c0_45 = arith.constant 0 : index
    %c0_46 = arith.constant 0 : index
    %135 = vector.load %arg6[%c0_45, %c0_46] : memref<32x64xbf16, #tpu.memory_space<vmem>>, vector<32x64xbf16>
    %cst_47 = arith.constant dense<0.000000e+00> : vector<8x64xf32>
    %136 = tpu.matmul %134, %135, %cst_47 {dimension_numbers = #tpu.dot_dimension_numbers<[1], [0], [0], [1], [0, 0, 1, 1], [], []>} : vector<8x32xbf16>, vector<32x64xbf16>, vector<8x64xf32> -> vector<8x64xf32>
    %c0_48 = arith.constant 0 : index
    %c0_49 = arith.constant 0 : index
    %137 = vector.load %arg7[%c0_48, %c0_49] : memref<1x64xf32, #tpu.memory_space<vmem>>, vector<1x64xf32>
    %138 = vector.broadcast %137 : vector<1x64xf32> to vector<8x64xf32>
    %139 = arith.addf %136, %138 : vector<8x64xf32>
    %cst_50 = arith.constant 0.000000e+00 : f32
    %140 = vector.broadcast %cst_50 : f32 to vector<8x64xf32>
    %141 = arith.maximumf %139, %140 : vector<8x64xf32>
    %142 = arith.truncf %141 : vector<8x64xf32> to vector<8x64xbf16>
    %c0_51 = arith.constant 0 : index
    %c0_52 = arith.constant 0 : index
    %143 = vector.load %arg8[%c0_51, %c0_52] : memref<64x32xbf16, #tpu.memory_space<vmem>>, vector<64x32xbf16>
    %cst_53 = arith.constant dense<0.000000e+00> : vector<8x32xf32>
    %144 = tpu.matmul %142, %143, %cst_53 {dimension_numbers = #tpu.dot_dimension_numbers<[1], [0], [0], [1], [0, 0, 1, 1], [], []>} : vector<8x64xbf16>, vector<64x32xbf16>, vector<8x32xf32> -> vector<8x32xf32>
    %145 = vector.broadcast %6 : vector<1x32xf32> to vector<8x32xf32>
    %146 = arith.addf %144, %145 : vector<8x32xf32>
    %147 = arith.addf %133, %146 : vector<8x32xf32>
    %cst_54 = arith.constant dense<0.000000e+00> : vector<8xf32>
    %148 = vector.multi_reduction <add>, %147, %cst_54 [1] : vector<8x32xf32> to vector<8xf32>
    %149 = vector.shape_cast %148 : vector<8xf32> to vector<8x1xf32>
    %cst_55 = arith.constant 3.200000e+01 : f32
    %150 = vector.broadcast %cst_55 : f32 to vector<8x1xf32>
    %151 = arith.divf %149, %150 : vector<8x1xf32>
    %152 = vector.broadcast %151 : vector<8x1xf32> to vector<8x32xf32>
    %153 = arith.subf %147, %152 : vector<8x32xf32>
    %154 = arith.mulf %153, %153 : vector<8x32xf32>
    %cst_56 = arith.constant dense<0.000000e+00> : vector<8xf32>
    %155 = vector.multi_reduction <add>, %154, %cst_56 [1] : vector<8x32xf32> to vector<8xf32>
    %156 = vector.shape_cast %155 : vector<8xf32> to vector<8x1xf32>
    %cst_57 = arith.constant 3.200000e+01 : f32
    %157 = vector.broadcast %cst_57 : f32 to vector<8x1xf32>
    %158 = arith.divf %156, %157 : vector<8x1xf32>
    %159 = vector.broadcast %151 : vector<8x1xf32> to vector<8x32xf32>
    %160 = arith.subf %147, %159 : vector<8x32xf32>
    %cst_58 = arith.constant 9.99999974E-6 : f32
    %161 = vector.broadcast %cst_58 : f32 to vector<8x1xf32>
    %162 = arith.addf %158, %161 : vector<8x1xf32>
    %163 = math.rsqrt %162 : vector<8x1xf32>
    %164 = vector.broadcast %163 : vector<8x1xf32> to vector<8x32xf32>
    %165 = arith.mulf %160, %164 : vector<8x32xf32>
    %166 = vector.broadcast %9 : vector<1x32xf32> to vector<8x32xf32>
    %167 = arith.mulf %165, %166 : vector<8x32xf32>
    %168 = vector.broadcast %10 : vector<1x32xf32> to vector<8x32xf32>
    %169 = arith.addf %167, %168 : vector<8x32xf32>
    %c0_59 = arith.constant 0 : index
    %c0_60 = arith.constant 0 : index
    %c0_61 = arith.constant 0 : index
    %170 = vector.load %arg10[%c0_59, %c0_60, %c0_61] : memref<1x8x32xf32, #tpu.memory_space<vmem>>, vector<1x8x32xf32>
    %171 = vector.shape_cast %170 : vector<1x8x32xf32> to vector<8x32xf32>
    %172 = vector.shape_cast %169 : vector<8x32xf32> to vector<1x8x32xf32>
    tpu.vector_store %arg10[%c0_59, %c0_60, %c0_61], %172 {strides = array<i32>} : memref<1x8x32xf32, #tpu.memory_space<vmem>>, vector<1x8x32xf32>,
    return
  }
  func.func @transform_0(%arg0: i32) -> (i32, i32, i32) {
    %c0_i32 = arith.constant 0 : i32
    %c0_i32_0 = arith.constant 0 : i32
    %c0_i32_1 = arith.constant 0 : i32
    return %arg0, %c0_i32, %c0_i32_0 : i32, i32, i32
  }
  func.func @transform_1(%arg0: i32) -> (i32, i32, i32) {
    %c0_i32 = arith.constant 0 : i32
    %c0_i32_0 = arith.constant 0 : i32
    %c0_i32_1 = arith.constant 0 : i32
    return %arg0, %c0_i32, %c0_i32_0 : i32, i32, i32
  }
  func.func @transform_2(%arg0: i32) -> (i32, i32) {
    %c0_i32 = arith.constant 0 : i32
    %c0_i32_0 = arith.constant 0 : i32
    %c0_i32_1 = arith.constant 0 : i32
    return %c0_i32, %c0_i32_0 : i32, i32
  }
  func.func @transform_3(%arg0: i32) -> (i32, i32) {
    %c0_i32 = arith.constant 0 : i32
    %c0_i32_0 = arith.constant 0 : i32
    %c0_i32_1 = arith.constant 0 : i32
    return %c0_i32, %c0_i32_0 : i32, i32
  }
  func.func @transform_4(%arg0: i32) -> (i32, i32, i32) {
    %c0_i32 = arith.constant 0 : i32
    %c0_i32_0 = arith.constant 0 : i32
    %c0_i32_1 = arith.constant 0 : i32
    %c0_i32_2 = arith.constant 0 : i32
    return %c0_i32, %c0_i32_0, %c0_i32_1 : i32, i32, i32
  }
  func.func @transform_5(%arg0: i32) -> (i32, i32) {
    %c0_i32 = arith.constant 0 : i32
    %c0_i32_0 = arith.constant 0 : i32
    %c0_i32_1 = arith.constant 0 : i32
    return %c0_i32, %c0_i32_0 : i32, i32
  }
  func.func @transform_6(%arg0: i32) -> (i32, i32) {
    %c0_i32 = arith.constant 0 : i32
    %c0_i32_0 = arith.constant 0 : i32
    %c0_i32_1 = arith.constant 0 : i32
    return %c0_i32, %c0_i32_0 : i32, i32
  }
  func.func @transform_7(%arg0: i32) -> (i32, i32) {
    %c0_i32 = arith.constant 0 : i32
    %c0_i32_0 = arith.constant 0 : i32
    %c0_i32_1 = arith.constant 0 : i32
    return %c0_i32, %c0_i32_0 : i32, i32
  }
  func.func @transform_8(%arg0: i32) -> (i32, i32) {
    %c0_i32 = arith.constant 0 : i32
    %c0_i32_0 = arith.constant 0 : i32
    %c0_i32_1 = arith.constant 0 : i32
    return %c0_i32, %c0_i32_0 : i32, i32
  }
  func.func @transform_9(%arg0: i32) -> (i32, i32, i32) {
    %c0_i32 = arith.constant 0 : i32
    %c0_i32_0 = arith.constant 0 : i32
    %c0_i32_1 = arith.constant 0 : i32
    return %arg0, %c0_i32, %c0_i32_0 : i32, i32, i32
  }
}

</mosaic_0001>

<llo_original>
// kernel: tpu_custom_call.1
$region0: #{tpu_custom_call.1}
  #allocation0 [shape = 'u32[]', space=smem, size = 0x4, offset = 0x4, fixed_abs, tag = 'smem constant byte address 0x4 - core index']
  #allocation1 [shape = 'u32[144,128]{1,0:T(1,128)}', space=vmem, size = 0x12000, scoped, tag = 'internal scratch']
  %s0 = inlined_call_operand.vmem [shape: f32[2,8,32], index: 0, kind: input, shape index: {}]
  %s1 = inlined_call_operand.hbm [shape: f32[2,1,8], index: 1, kind: input, shape index: {}]
  %s2 = inlined_call_operand.vmem [shape: bf16[32,96], index: 2, kind: input, shape index: {}]
  %s3 = inlined_call_operand.vmem [shape: f32[1,96], index: 3, kind: input, shape index: {}]
  %s4 = inlined_call_operand.vmem [shape: bf16[4,8,32], index: 4, kind: input, shape index: {}]
  %s5 = inlined_call_operand.hbm [shape: bf16[32,64], index: 5, kind: input, shape index: {}]
  %s6 = inlined_call_operand.vmem [shape: f32[1,64], index: 6, kind: input, shape index: {}]
  %s7 = inlined_call_operand.vmem [shape: bf16[64,32], index: 7, kind: input, shape index: {}]
  %s8 = inlined_call_operand.vmem [shape: f32[6,32], index: 8, kind: input, shape index: {}]
  %s9 = inlined_call_operand.hbm [shape: f32[2,8,32], index: 9, kind: output, shape index: {}]
  %s10 = sld [smem:[#allocation0]]
  $region77: #{tpu_custom_call.1} parent=0
    _
  %s12 = ssub.s32 1, %s10
  %s13 = scalar_select 0, %s12, %s10
  $region1: #{tpu_custom_call.1} parent=0
    #allocation2 [shape = 'u8[1024]{0}', space=vmem, size = 0x400, scoped, tag = 'input window, operand 1']
    #allocation3 [shape = 's32[2]{0}', space=sflag, size = 0x8, scoped, tag = 'scoped memory for tpu_custom_call.1']
    #allocation4 [shape = 's32[2]{0}', space=sflag, size = 0x8, scoped, tag = 'scoped memory for tpu_custom_call.1']
    #allocation5 [shape = 'u8[8192]{0}', space=vmem, size = 0x2000, scoped, tag = 'input window, operand 5, single buffered']
    #allocation6 [shape = 's32[1]{0}', space=sflag, size = 0x4, scoped, tag = 'scoped memory for tpu_custom_call.1']
    #allocation7 [shape = 'u8[8192]{0}', space=vmem, size = 0x2000, scoped, tag = 'output window, operand 0']
    %14 = vsyncpa [#allocation3], 0
    %s15 = scalar_lea.sflag [#allocation3], 1
    %16 = vsyncpa %s15, 0
    %17 = vsyncpa [#allocation6], 0
    %18 = vsyncpa [#allocation4], 0
    %s19 = scalar_lea.sflag [#allocation4], 1
    %20 = vsyncpa %s19, 0
    loop: start=0, step=1, limit=4
    $region2: #{tpu_custom_call.1} parent=1 // loop_pre_header
      _
    $region3: #{tpu_custom_call.1} parent=1 // loop_header
      %s22 = sphi 0, %s26
      %p23 = scmp.ge.s32.totalorder %s22, 4
      %s32 = sphi 0, %s34
      %s35 = sphi 0, %s32
      %s36 = sphi 0, %s35
      %s52 = sphi 0, %s36
      %s58 = sphi 0, %s60
      %s61 = sphi 0, %s58
      %s62 = sphi 0, %s61
      %s78 = sphi 0, %s62
      %s82 = sphi 0, %s82
      %s84 = sphi 0, %s82
      %s85 = sphi 0, %s84
      %s99 = sphi 0, %s85
      %s103 = sphi 0, %s103
      %s105 = sphi 0, %s103
      %s106 = sphi 0, %s105
      %s120 = sphi 0, %s106
      %s124 = sphi 0, %s124
      %s126 = sphi 0, %s124
      %s127 = sphi 0, %s126
      %s141 = sphi 0, %s127
      %s145 = sphi 0, %s145
      %s147 = sphi 0, %s145
      %s148 = sphi 0, %s147
      %s162 = sphi 0, %s148
      %s166 = sphi 0, %s166
      %s168 = sphi 0, %s166
      %s169 = sphi 0, %s168
      %s183 = sphi 0, %s169
      %s187 = sphi 0, %s187
      %s189 = sphi 0, %s187
      %s190 = sphi 0, %s189
      %s204 = sphi 0, %s190
      %s208 = sphi 0, %s208
      %s210 = sphi 0, %s208
      %s211 = sphi 0, %s210
      %s225 = sphi 0, %s211
      %s231 = sphi 0, %s233
      %s234 = sphi 0, %s231
      %s235 = sphi 0, %s234
      %s251 = sphi 0, %s235
    $region4: #{tpu_custom_call.1} parent=1 // loop_header_branch
      %25 = sbr.rel (%p23) target = $region8
    $region5: #{tpu_custom_call.1} parent=1 // loop_body
      %s27 = ssub.s32 %s22, 1
      %s28 = ssub.s32 %s22, 2
      %s29 = sadd.s32 %s22, 1
      %s30 = ssub.s32 %s22, %s29
      %p31 = scmp.eq.s32.totalorder %s30, 0
      %s33 = sadd.s32 %s32, 1
      %s34 = scalar_select %p31, %s32, %s33
      %p37 = pneg %p31
      %p38 = scmp.eq.s32.totalorder %s22, 1
      %p39 = por %p37, %p38
      %p40 = scmp.ne.s32.totalorder %s32, %s35
      %p41 = scmp.eq.s32.totalorder %s22, 0
      %p42 = por %p40, %p41
      %p43 = scmp.ne.s32.totalorder %s32, %s35
      %p44 = scmp.eq.s32.totalorder %s27, 1
      %p45 = por %p43, %p44
      %p46 = scmp.ne.s32.totalorder %s35, %s36
      %p47 = scmp.eq.s32.totalorder %s27, 0
      %p48 = por %p46, %p47
      %p49 = scmp.ne.s32.totalorder %s35, %s36
      %p50 = scmp.eq.s32.totalorder %s28, 1
      %p51 = por %p49, %p50
      %p53 = scmp.ne.s32.totalorder %s36, %s52
      %p54 = scmp.eq.s32.totalorder %s28, 0
      %p55 = por %p53, %p54
      %s56 = ssub.s32 %s22, %s29
      %p57 = scmp.eq.s32.totalorder %s56, 0
      %s59 = sadd.s32 %s58, 1
      %s60 = scalar_select %p57, %s58, %s59
      %p63 = pneg %p57
      %p64 = scmp.eq.s32.totalorder %s22, 1
      %p65 = por %p63, %p64
      %p66 = scmp.ne.s32.totalorder %s58, %s61
      %p67 = scmp.eq.s32.totalorder %s22, 0
      %p68 = por %p66, %p67
      %p69 = scmp.ne.s32.totalorder %s58, %s61
      %p70 = scmp.eq.s32.totalorder %s27, 1
      %p71 = por %p69, %p70
      %p72 = scmp.ne.s32.totalorder %s61, %s62
      %p73 = scmp.eq.s32.totalorder %s27, 0
      %p74 = por %p72, %p73
      %p75 = scmp.ne.s32.totalorder %s61, %s62
      %p76 = scmp.eq.s32.totalorder %s28, 1
      %p77 = por %p75, %p76
      %p79 = scmp.ne.s32.totalorder %s62, %s78
      %p80 = scmp.eq.s32.totalorder %s28, 0
      %p81 = por %p79, %p80
      %s83 = sadd.s32 %s82, 1
      %p86 = scmp.eq.s32.totalorder %s22, 1
      %p87 = scmp.ne.s32.totalorder %s82, %s84
      %p88 = scmp.eq.s32.totalorder %s22, 0
      %p89 = por %p87, %p88
      %p90 = scmp.ne.s32.totalorder %s82, %s84
      %p91 = scmp.eq.s32.totalorder %s27, 1
      %p92 = por %p90, %p91
      %p93 = scmp.ne.s32.totalorder %s84, %s85
      %p94 = scmp.eq.s32.totalorder %s27, 0
      %p95 = por %p93, %p94
      %p96 = scmp.ne.s32.totalorder %s84, %s85
      %p97 = scmp.eq.s32.totalorder %s28, 1
      %p98 = por %p96, %p97
      %p100 = scmp.ne.s32.totalorder %s85, %s99
      %p101 = scmp.eq.s32.totalorder %s28, 0
      %p102 = por %p100, %p101
      %s104 = sadd.s32 %s103, 1
      %p107 = scmp.eq.s32.totalorder %s22, 1
      %p108 = scmp.ne.s32.totalorder %s103, %s105
      %p109 = scmp.eq.s32.totalorder %s22, 0
      %p110 = por %p108, %p109
      %p111 = scmp.ne.s32.totalorder %s103, %s105
      %p112 = scmp.eq.s32.totalorder %s27, 1
      %p113 = por %p111, %p112
      %p114 = scmp.ne.s32.totalorder %s105, %s106
      %p115 = scmp.eq.s32.totalorder %s27, 0
      %p116 = por %p114, %p115
      %p117 = scmp.ne.s32.totalorder %s105, %s106
      %p118 = scmp.eq.s32.totalorder %s28, 1
      %p119 = por %p117, %p118
      %p121 = scmp.ne.s32.totalorder %s106, %s120
      %p122 = scmp.eq.s32.totalorder %s28, 0
      %p123 = por %p121, %p122
      %s125 = sadd.s32 %s124, 1
      %p128 = scmp.eq.s32.totalorder %s22, 1
      %p129 = scmp.ne.s32.totalorder %s124, %s126
      %p130 = scmp.eq.s32.totalorder %s22, 0
      %p131 = por %p129, %p130
      %p132 = scmp.ne.s32.totalorder %s124, %s126
      %p133 = scmp.eq.s32.totalorder %s27, 1
      %p134 = por %p132, %p133
      %p135 = scmp.ne.s32.totalorder %s126, %s127
      %p136 = scmp.eq.s32.totalorder %s27, 0
      %p137 = por %p135, %p136
      %p138 = scmp.ne.s32.totalorder %s126, %s127
      %p139 = scmp.eq.s32.totalorder %s28, 1
      %p140 = por %p138, %p139
      %p142 = scmp.ne.s32.totalorder %s127, %s141
      %p143 = scmp.eq.s32.totalorder %s28, 0
      %p144 = por %p142, %p143
      %s146 = sadd.s32 %s145, 1
      %p149 = scmp.eq.s32.totalorder %s22, 1
      %p150 = scmp.ne.s32.totalorder %s145, %s147
      %p151 = scmp.eq.s32.totalorder %s22, 0
      %p152 = por %p150, %p151
      %p153 = scmp.ne.s32.totalorder %s145, %s147
      %p154 = scmp.eq.s32.totalorder %s27, 1
      %p155 = por %p153, %p154
      %p156 = scmp.ne.s32.totalorder %s147, %s148
      %p157 = scmp.eq.s32.totalorder %s27, 0
      %p158 = por %p156, %p157
      %p159 = scmp.ne.s32.totalorder %s147, %s148
      %p160 = scmp.eq.s32.totalorder %s28, 1
      %p161 = por %p159, %p160
      %p163 = scmp.ne.s32.totalorder %s148, %s162
      %p164 = scmp.eq.s32.totalorder %s28, 0
      %p165 = por %p163, %p164
      %s167 = sadd.s32 %s166, 1
      %p170 = scmp.eq.s32.totalorder %s22, 1
      %p171 = scmp.ne.s32.totalorder %s166, %s168
      %p172 = scmp.eq.s32.totalorder %s22, 0
      %p173 = por %p171, %p172
      %p174 = scmp.ne.s32.totalorder %s166, %s168
      %p175 = scmp.eq.s32.totalorder %s27, 1
      %p176 = por %p174, %p175
      %p177 = scmp.ne.s32.totalorder %s168, %s169
      %p178 = scmp.eq.s32.totalorder %s27, 0
      %p179 = por %p177, %p178
      %p180 = scmp.ne.s32.totalorder %s168, %s169
      %p181 = scmp.eq.s32.totalorder %s28, 1
      %p182 = por %p180, %p181
      %p184 = scmp.ne.s32.totalorder %s169, %s183
      %p185 = scmp.eq.s32.totalorder %s28, 0
      %p186 = por %p184, %p185
      %s188 = sadd.s32 %s187, 1
      %p191 = scmp.eq.s32.totalorder %s22, 1
      %p192 = scmp.ne.s32.totalorder %s187, %s189
      %p193 = scmp.eq.s32.totalorder %s22, 0
      %p194 = por %p192, %p193
      %p195 = scmp.ne.s32.totalorder %s187, %s189
      %p196 = scmp.eq.s32.totalorder %s27, 1
      %p197 = por %p195, %p196
      %p198 = scmp.ne.s32.totalorder %s189, %s190
      %p199 = scmp.eq.s32.totalorder %s27, 0
      %p200 = por %p198, %p199
      %p201 = scmp.ne.s32.totalorder %s189, %s190
      %p202 = scmp.eq.s32.totalorder %s28, 1
      %p203 = por %p201, %p202
      %p205 = scmp.ne.s32.totalorder %s190, %s204
      %p206 = scmp.eq.s32.totalorder %s28, 0
      %p207 = por %p205, %p206
      %s209 = sadd.s32 %s208, 1
      %p212 = scmp.eq.s32.totalorder %s22, 1
      %p213 = scmp.ne.s32.totalorder %s208, %s210
      %p214 = scmp.eq.s32.totalorder %s22, 0
      %p215 = por %p213, %p214
      %p216 = scmp.ne.s32.totalorder %s208, %s210
      %p217 = scmp.eq.s32.totalorder %s27, 1
      %p218 = por %p216, %p217
      %p219 = scmp.ne.s32.totalorder %s210, %s211
      %p220 = scmp.eq.s32.totalorder %s27, 0
      %p221 = por %p219, %p220
      %p222 = scmp.ne.s32.totalorder %s210, %s211
      %p223 = scmp.eq.s32.totalorder %s28, 1
      %p224 = por %p222, %p223
      %p226 = scmp.ne.s32.totalorder %s211, %s225
      %p227 = scmp.eq.s32.totalorder %s28, 0
      %p228 = por %p226, %p227
      %s229 = ssub.s32 %s22, %s29
      %p230 = scmp.eq.s32.totalorder %s229, 0
      %s232 = sadd.s32 %s231, 1
      %s233 = scalar_select %p230, %s231, %s232
      %p236 = pneg %p230
      %p237 = scmp.eq.s32.totalorder %s22, 1
      %p238 = por %p236, %p237
      %p239 = scmp.ne.s32.totalorder %s231, %s234
      %p240 = scmp.eq.s32.totalorder %s22, 0
      %p241 = por %p239, %p240
      %p242 = scmp.ne.s32.totalorder %s231, %s234
      %p243 = scmp.eq.s32.totalorder %s27, 1
      %p244 = por %p242, %p243
      %p245 = scmp.ne.s32.totalorder %s234, %s235
      %p246 = scmp.eq.s32.totalorder %s27, 0
      %p247 = por %p245, %p246
      %p248 = scmp.ne.s32.totalorder %s234, %s235
      %p249 = scmp.eq.s32.totalorder %s28, 1
      %p250 = por %p248, %p249
      %p252 = scmp.ne.s32.totalorder %s235, %s251
      %p253 = scmp.eq.s32.totalorder %s28, 0
      %p254 = por %p252, %p253
      %p255 = scmp.le.s32.totalorder 1, %s22
      %p256 = scmp.lt.s32.totalorder %s22, 3
      %p257 = pnand %p255, %p256
      %p258 = pneg %p257
      // Predicated region
      $region9: #{tpu_custom_call.1} parent=5 // pred_check
        _
      $region10: #{tpu_custom_call.1} parent=5 // pred_check_branch
        %260 = sbr.rel (%p257) target = $region12
      $region11: #{tpu_custom_call.1} parent=5 // pred_region
        %s261 = ssub.s32 %s22, 1
        // Predicated region
        $region13: #{tpu_custom_call.1} parent=11 // pred_check
          %p262 = pneg %p95
        $region14: #{tpu_custom_call.1} parent=11 // pred_check_branch
          %264 = sbr.rel (%p262) target = $region16
        $region15: #{tpu_custom_call.1} parent=11 // pred_region
          _
        $region16: #{tpu_custom_call.1} parent=11 // pred_fallthru
          _
        // Predicated region
        $region17: #{tpu_custom_call.1} parent=11 // pred_check
          %p265 = pneg %p116
        $region18: #{tpu_custom_call.1} parent=11 // pred_check_branch
          %267 = sbr.rel (%p265) target = $region20
        $region19: #{tpu_custom_call.1} parent=11 // pred_region
          _
        $region20: #{tpu_custom_call.1} parent=11 // pred_fallthru
          _
        // Predicated region
        $region21: #{tpu_custom_call.1} parent=11 // pred_check
          %p268 = pneg %p137
        $region22: #{tpu_custom_call.1} parent=11 // pred_check_branch
          %270 = sbr.rel (%p268) target = $region24
        $region23: #{tpu_custom_call.1} parent=11 // pred_region
          _
        $region24: #{tpu_custom_call.1} parent=11 // pred_fallthru
          _
        // Predicated region
        $region25: #{tpu_custom_call.1} parent=11 // pred_check
          %p271 = pneg %p158
        $region26: #{tpu_custom_call.1} parent=11 // pred_check_branch
          %273 = sbr.rel (%p271) target = $region28
        $region27: #{tpu_custom_call.1} parent=11 // pred_region
          %s275 = ssub.s32 256, 256
          %276 = vsyncadd [#allocation6], %s275
          %s277 = sshll.u32 [#allocation5], 4
          %s278 = int_to_ptr.vmem [resolvable:$true] %s277
          %283 = dma.hbm_to_vmem [thread:$0]  %s5, 256, %s278, [#allocation6], 64, 64, 4
        $region28: #{tpu_custom_call.1} parent=11 // pred_fallthru
          _
        // Predicated region
        $region29: #{tpu_custom_call.1} parent=11 // pred_check
          %p284 = pneg %p179
        $region30: #{tpu_custom_call.1} parent=11 // pred_check_branch
          %286 = sbr.rel (%p284) target = $region32
        $region31: #{tpu_custom_call.1} parent=11 // pred_region
          _
        $region32: #{tpu_custom_call.1} parent=11 // pred_fallthru
          _
        // Predicated region
        $region33: #{tpu_custom_call.1} parent=11 // pred_check
          %p287 = pneg %p200
        $region34: #{tpu_custom_call.1} parent=11 // pred_check_branch
          %289 = sbr.rel (%p287) target = $region36
        $region35: #{tpu_custom_call.1} parent=11 // pred_region
          _
        $region36: #{tpu_custom_call.1} parent=11 // pred_fallthru
          _
        // Predicated region
        $region37: #{tpu_custom_call.1} parent=11 // pred_check
          %p290 = pneg %p221
        $region38: #{tpu_custom_call.1} parent=11 // pred_check_branch
          %292 = sbr.rel (%p290) target = $region40
        $region39: #{tpu_custom_call.1} parent=11 // pred_region
          _
        $region40: #{tpu_custom_call.1} parent=11 // pred_fallthru
          _
      $region12: #{tpu_custom_call.1} parent=5 // pred_fallthru
        _
      %p293 = scmp.lt.s32.totalorder %s22, 2
      // Predicated region
      $region41: #{tpu_custom_call.1} parent=5 // pred_check
        %p294 = pneg %p293
      $region42: #{tpu_custom_call.1} parent=5 // pred_check_branch
        %296 = sbr.rel (%p294) target = $region44
      $region43: #{tpu_custom_call.1} parent=5 // pred_region
        // Predicated region
        $region45: #{tpu_custom_call.1} parent=43 // pred_check
          %p297 = pneg %p42
        $region46: #{tpu_custom_call.1} parent=43 // pred_check_branch
          %299 = sbr.rel (%p297) target = $region48
        $region47: #{tpu_custom_call.1} parent=43 // pred_region
          %p300 = scmp.lt.s32.totalorder %s22, 1
          %s301 = scalar_select %p300, %s22, 1
          %s302 = smul.addr %s301, 8
          %s303 = scalar_lea.vmem %s0, %s302
        $region48: #{tpu_custom_call.1} parent=43 // pred_fallthru
          _
        // Predicated region
        $region49: #{tpu_custom_call.1} parent=43 // pred_check
          %p304 = pneg %p68
        $region50: #{tpu_custom_call.1} parent=43 // pred_check_branch
          %306 = sbr.rel (%p304) target = $region52
        $region51: #{tpu_custom_call.1} parent=43 // pred_region
          %s307 = sand.u32 %s58, 1
          %s308 = scalar_lea.sflag [#allocation3], %s307
          %s309 = sand.u32 %s58, 1
          %s310 = scalar_lea.vmem [#allocation2], %s309
          %s312 = ssub.s32 16, 16
          %313 = vsyncadd %s308, %s312
          %s314 = smul.addr %s22, 16
          %s315 = scalar_lea.hbm %s1, %s314
          %s317 = sshll.u32 %s310, 4
          %s318 = int_to_ptr.vmem [resolvable:$true] %s317
          %320 = dma.hbm_to_vmem [thread:$0]  %s315, 16, %s318, %s308
        $region52: #{tpu_custom_call.1} parent=43 // pred_fallthru
          _
      $region44: #{tpu_custom_call.1} parent=5 // pred_fallthru
        _
      %p321 = scmp.le.s32.totalorder 1, %s22
      %p322 = scmp.lt.s32.totalorder %s22, 3
      %p323 = pnand %p321, %p322
      %p324 = pneg %p323
      // Predicated region
      $region53: #{tpu_custom_call.1} parent=5 // pred_check
        _
      $region54: #{tpu_custom_call.1} parent=5 // pred_check_branch
        %326 = sbr.rel (%p323) target = $region56
      $region55: #{tpu_custom_call.1} parent=5 // pred_region
        %s327 = ssub.s32 %s22, 1
        %s328 = sand.u32 %s61, 1
        %s329 = scalar_lea.sflag [#allocation3], %s328
        %s330 = sand.u32 %s61, 1
        %s331 = scalar_lea.vmem [#allocation2], %s330
        // Predicated region
        $region57: #{tpu_custom_call.1} parent=55 // pred_check
          %p332 = pneg %p74
        $region58: #{tpu_custom_call.1} parent=55 // pred_check_branch
          %334 = sbr.rel (%p332) target = $region60
        $region59: #{tpu_custom_call.1} parent=55 // pred_region
          %335 = dma.done %s329, 16
        $region60: #{tpu_custom_call.1} parent=55 // pred_fallthru
          _
        // Predicated region
        $region61: #{tpu_custom_call.1} parent=55 // pred_check
          %p336 = pneg %p158
        $region62: #{tpu_custom_call.1} parent=55 // pred_check_branch
          %338 = sbr.rel (%p336) target = $region64
        $region63: #{tpu_custom_call.1} parent=55 // pred_region
          %339 = dma.done [#allocation6], 256
        $region64: #{tpu_custom_call.1} parent=55 // pred_fallthru
          _
        %p340 = scmp.lt.s32.totalorder %s27, 1
        %s341 = scalar_select %p340, %s27, 1
        %s342 = smul.addr %s341, 8
        %s343 = scalar_lea.vmem %s0, %s342
        %p344 = pneg %p48
        %p345 = pneg %p45
        %s346 = sand.u32 %s61, 1
        %s347 = scalar_lea.sflag [#allocation3], %s346
        %s348 = sand.u32 %s61, 1
        %s349 = scalar_lea.vmem [#allocation2], %s348
        %p350 = pneg %p74
        %p351 = pneg %p71
        %p352 = pneg %p95
        %p353 = pneg %p92
        %p354 = pneg %p116
        %p355 = pneg %p113
        %p356 = pneg %p137
        %p357 = pneg %p134
        %p358 = pneg %p158
        %p359 = pneg %p155
        %p360 = pneg %p179
        %p361 = pneg %p176
        %p362 = pneg %p200
        %p363 = pneg %p197
        %p364 = pneg %p221
        %p365 = pneg %p218
        %p366 = pneg %p247
        %p367 = pneg %p244
        %s368 = sand.u32 %s234, 1
        %s369 = scalar_lea.sflag [#allocation4], %s368
        %s370 = sand.u32 %s234, 1
        %s371 = smul.addr %s370, 8
        %s372 = scalar_lea.vmem [#allocation7], %s371
        %p373 = scmp.lt.s32.totalorder %s27, 1
        %s374 = scalar_select %p373, %s27, 1
        %s375 = smul.addr %s374, 8
        %s376 = scalar_lea.vmem %s0, %s375
        %v378 = vld [vmem:[%s376] sm:$0xff]
        %v379 = vld [vmem:[%s331] sm:$0x1]
        %v380 = vld [vmem:[%s8] sm:$0x3f]
        %v381 = vpack.c.bf16 %v378, %v378
        %v382 = vld [vmem:[%s2] sm:$0xf]
        %v383 = vld [vmem:[%s2 + $0x4] sm:$0xf]
        %v384 = vld [vmem:[%s2 + $0x8] sm:$0xf]
        %v385 = vld [vmem:[%s2 + $0xc] sm:$0xf]
        %v386 = vld [vmem:[%s3] sm:$0x1]
        %v388 = vlaneseq
        %v389 = vshrl.u32 %v388, 7
        %v390 = vsub.s32 0, %v389
        %v391 = vrot.slane %v386, %v390
        %v397 = vunpack.c.l.b16 %v382
        %v398 = vunpack.c.l.b16 %v383
        %v399 = vunpack.c.l.b16 %v384
        %v400 = vunpack.c.l.b16 %v385
        %v401 = vpack.c.b16 %v398, %v397
        %v402 = vpack.c.b16 %v400, %v399
        %vm405 = vcmask 261120
        %v407 = vsel %vm405, %v381, 0
        %409 = vmatprep.subr.bf16.mxu0 0
        %410 = vmatpush1.bf16.msra.mxu0 0
        %411 = vmatprep.subr.bf16.mxu0 0
        %412 = vmatpush1.bf16.msra.mxu0 0
        %413 = vmatprep.subr.bf16.mxu0 0
        %414 = vmatpush1.bf16.msra.mxu0 0
        %415 = vmatprep.subr.bf16.mxu0 0
        %416 = vmatpush1.bf16.msra.mxu0 0
        %417 = vmatprep.subr.bf16.mxu0 0
        %418 = vmatpush1.bf16.msra.mxu0 0
        %419 = vmatprep.subr.bf16.mxu0 0
        %420 = vmatpush1.bf16.msra.mxu0 0
        %421 = vmatprep.subr.bf16.mxu0 0
        %422 = vmatpush1.bf16.msra.mxu0 %v402
        %423 = vmatprep.subr.bf16.mxu0 0
        %424 = vmatpush1.bf16.msra.mxu0 %v401
        %425 = vmatprep.subr.bf16.mxu0 0
        %426 = vmatpush2.bf16.msra.mxu0 0
        %427 = vmatprep.subr.bf16.mxu0 0
        %428 = vmatpush2.bf16.msra.mxu0 0
        %429 = vmatprep.subr.bf16.mxu0 0
        %430 = vmatpush2.bf16.msra.mxu0 0
        %431 = vmatprep.subr.bf16.mxu0 0
        %432 = vmatpush2.bf16.msra.mxu0 0
        %433 = vmatprep.subr.bf16.mxu0 0
        %434 = vmatpush2.bf16.msra.mxu0 0
        %435 = vmatprep.subr.bf16.mxu0 0
        %436 = vmatpush2.bf16.msra.mxu0 0
        %437 = vmatprep.subr.bf16.mxu0 0
        %438 = vmatpush2.bf16.msra.mxu0 0
        %439 = vmatprep.subr.bf16.mxu0 0
        %440 = vmatpush2.bf16.msra.mxu0 0
        %441 = vmatprep.mubr.bf16.mxu0 0
        %442 = vmatmul.mubr.bf16.gmra.mxu0 %v407
        %v443 = vpop.f32.mrf.mxu0
        %v444 = vadd.f32 %v391, %v443
        %v445 = vpop.f32.mrf.mxu0
        %v446 = vpop.f32.mrf.mxu0
        %v447 = vpop.f32.mrf.mxu0
        %448 = vdwg.mxu0
        %v449 = vpack.c.bf16 %v444, %v444
        %v451 = vlaneseq
        %v452 = vshrl.u32 %v451, 7
        %v453 = vsub.s32 0, %v452
        %v454 = vrot.slane %v379, %v453
        %457 = vrot.lane.b32.xlu0 %v449, 96
        %v458 = vpop.permute.xlu0 %457
        %vm459 = vcmask 64512
        %v461 = vsel %vm459, %v449, 0
        %v464 = vsel %vm459, %v458, 0
        %466 = vmatprep.subr.bf16.mxu0 0
        %467 = vmatpush1.bf16.xpose.msra.mxu0 0
        %468 = vmatprep.subr.bf16.mxu0 0
        %469 = vmatpush1.bf16.xpose.msra.mxu0 0
        %470 = vmatprep.subr.bf16.mxu0 0
        %471 = vmatpush1.bf16.xpose.msra.mxu0 0
        %472 = vmatprep.subr.bf16.mxu0 0
        %473 = vmatpush1.bf16.xpose.msra.mxu0 0
        %474 = vmatprep.subr.bf16.mxu0 0
        %475 = vmatpush1.bf16.xpose.msra.mxu0 0
        %476 = vmatprep.subr.bf16.mxu0 0
        %477 = vmatpush1.bf16.xpose.msra.mxu0 0
        %478 = vmatprep.subr.bf16.mxu0 0
        %479 = vmatpush1.bf16.xpose.msra.mxu0 0
        %480 = vmatprep.subr.bf16.mxu0 0
        %481 = vmatpush1.bf16.xpose.msra.mxu0 %v464
        %482 = vmatprep.subr.bf16.mxu0 0
        %483 = vmatpush2.bf16.xpose.msra.mxu0 0
        %484 = vmatprep.subr.bf16.mxu0 0
        %485 = vmatpush2.bf16.xpose.msra.mxu0 0
        %486 = vmatprep.subr.bf16.mxu0 0
        %487 = vmatpush2.bf16.xpose.msra.mxu0 0
        %488 = vmatprep.subr.bf16.mxu0 0
        %489 = vmatpush2.bf16.xpose.msra.mxu0 0
        %490 = vmatprep.subr.bf16.mxu0 0
        %491 = vmatpush2.bf16.xpose.msra.mxu0 0
        %492 = vmatprep.subr.bf16.mxu0 0
        %493 = vmatpush2.bf16.xpose.msra.mxu0 0
        %494 = vmatprep.subr.bf16.mxu0 0
        %495 = vmatpush2.bf16.xpose.msra.mxu0 0
        %496 = vmatprep.subr.bf16.mxu0 0
        %497 = vmatpush2.bf16.xpose.msra.mxu0 0
        %498 = vmatprep.mubr.bf16.mxu0 0
        %499 = vmatmul.mubr.bf16.gmra.mxu0 %v461
        %v500 = vpop.f32.mrf.mxu0
        %v501 = vadd.f32 %v454, %v500
        %v502 = vpop.f32.mrf.mxu0
        %v503 = vpop.f32.mrf.mxu0
        %v504 = vpop.f32.mrf.mxu0
        %505 = vdwg.mxu0
        %v506 = vsel %vm459, %v501, -inf
        %507 = vmax.xlane.f32.xlu0 %v506
        %v508 = vpop.xlane.xlu0 %507
        %v509 = vsub.f32 %v501, %v508
        %v510 = vmul.f32 %v509, 1.442695
        %v511 = vpow.pop %v510
        %v512 = vsel %vm459, %v511, 0.0
        %513 = vadd.xlane.f32.xlu0 %v512
        %v514 = vpop.xlane.xlu0 %513
        %v515 = vrcp.pop %v514
        %v516 = vmul.f32 %v511, %v515
        %v517 = vpack.c.bf16 %v516, %v516
        %518 = vrot.lane.b32.xlu0 %v449, 64
        %v519 = vpop.permute.xlu0 %518
        %v521 = vsel %vm459, %v517, 0
        %vm523 = vcmask 1043456
        %v525 = vsel %vm523, %v519, 0
        %527 = vmatprep.subr.bf16.mxu0 0
        %528 = vmatpush1.bf16.msra.mxu0 0
        %529 = vmatprep.subr.bf16.mxu0 0
        %530 = vmatpush1.bf16.msra.mxu0 0
        %531 = vmatprep.subr.bf16.mxu0 0
        %532 = vmatpush1.bf16.msra.mxu0 0
        %533 = vmatprep.subr.bf16.mxu0 0
        %534 = vmatpush1.bf16.msra.mxu0 0
        %535 = vmatprep.subr.bf16.mxu0 0
        %536 = vmatpush1.bf16.msra.mxu0 0
        %537 = vmatprep.subr.bf16.mxu0 0
        %538 = vmatpush1.bf16.msra.mxu0 0
        %539 = vmatprep.subr.bf16.mxu0 0
        %540 = vmatpush1.bf16.msra.mxu0 0
        %541 = vmatprep.subr.bf16.mxu0 0
        %542 = vmatpush1.bf16.msra.mxu0 %v525
        %543 = vmatprep.subr.bf16.mxu0 0
        %544 = vmatpush2.bf16.msra.mxu0 0
        %545 = vmatprep.subr.bf16.mxu0 0
        %546 = vmatpush2.bf16.msra.mxu0 0
        %547 = vmatprep.subr.bf16.mxu0 0
        %548 = vmatpush2.bf16.msra.mxu0 0
        %549 = vmatprep.subr.bf16.mxu0 0
        %550 = vmatpush2.bf16.msra.mxu0 0
        %551 = vmatprep.subr.bf16.mxu0 0
        %552 = vmatpush2.bf16.msra.mxu0 0
        %553 = vmatprep.subr.bf16.mxu0 0
        %554 = vmatpush2.bf16.msra.mxu0 0
        %555 = vmatprep.subr.bf16.mxu0 0
        %556 = vmatpush2.bf16.msra.mxu0 0
        %557 = vmatprep.subr.bf16.mxu0 0
        %558 = vmatpush2.bf16.msra.mxu0 0
        %559 = vmatprep.mubr.bf16.mxu0 0
        %560 = vmatmul.mubr.bf16.gmra.mxu0 %v521
        %v561 = vpop.f32.mrf.mxu0
        %v562 = vadd.f32 0.0, %v561
        %v563 = vpop.f32.mrf.mxu0
        %v564 = vpop.f32.mrf.mxu0
        %v565 = vpop.f32.mrf.mxu0
        %566 = vdwg.mxu0
        %v567 = vpack.c.bf16 %v562, %v562
        %v568 = vld [vmem:[%s4] sm:$0xf]
        %569 = vrot.lane.b32.xlu0 %v449, 120
        %v570 = vpop.permute.xlu0 %569
        %571 = vrot.lane.b32.xlu0 %v449, 88
        %v572 = vpop.permute.xlu0 %571
        %v574 = vsel %vm459, %v570, 0
        %v577 = vsel %vm459, %v572, 0
        %579 = vmatprep.subr.bf16.mxu0 0
        %580 = vmatpush1.bf16.xpose.msra.mxu0 0
        %581 = vmatprep.subr.bf16.mxu0 0
        %582 = vmatpush1.bf16.xpose.msra.mxu0 0
        %583 = vmatprep.subr.bf16.mxu0 0
        %584 = vmatpush1.bf16.xpose.msra.mxu0 0
        %585 = vmatprep.subr.bf16.mxu0 0
        %586 = vmatpush1.bf16.xpose.msra.mxu0 0
        %587 = vmatprep.subr.bf16.mxu0 0
        %588 = vmatpush1.bf16.xpose.msra.mxu0 0
        %589 = vmatprep.subr.bf16.mxu0 0
        %590 = vmatpush1.bf16.xpose.msra.mxu0 0
        %591 = vmatprep.subr.bf16.mxu0 0
        %592 = vmatpush1.bf16.xpose.msra.mxu0 0
        %593 = vmatprep.subr.bf16.mxu0 0
        %594 = vmatpush1.bf16.xpose.msra.mxu0 %v577
        %595 = vmatprep.subr.bf16.mxu0 0
        %596 = vmatpush2.bf16.xpose.msra.mxu0 0
        %597 = vmatprep.subr.bf16.mxu0 0
        %598 = vmatpush2.bf16.xpose.msra.mxu0 0
        %599 = vmatprep.subr.bf16.mxu0 0
        %600 = vmatpush2.bf16.xpose.msra.mxu0 0
        %601 = vmatprep.subr.bf16.mxu0 0
        %602 = vmatpush2.bf16.xpose.msra.mxu0 0
        %603 = vmatprep.subr.bf16.mxu0 0
        %604 = vmatpush2.bf16.xpose.msra.mxu0 0
        %605 = vmatprep.subr.bf16.mxu0 0
        %606 = vmatpush2.bf16.xpose.msra.mxu0 0
        %607 = vmatprep.subr.bf16.mxu0 0
        %608 = vmatpush2.bf16.xpose.msra.mxu0 0
        %609 = vmatprep.subr.bf16.mxu0 0
        %610 = vmatpush2.bf16.xpose.msra.mxu0 0
        %611 = vmatprep.mubr.bf16.mxu0 0
        %612 = vmatmul.mubr.bf16.gmra.mxu0 %v574
        %v613 = vpop.f32.mrf.mxu0
        %v614 = vadd.f32 %v454, %v613
        %v615 = vpop.f32.mrf.mxu0
        %v616 = vpop.f32.mrf.mxu0
        %v617 = vpop.f32.mrf.mxu0
        %618 = vdwg.mxu0
        %v619 = vsel %vm459, %v614, -inf
        %620 = vmax.xlane.f32.xlu0 %v619
        %v621 = vpop.xlane.xlu0 %620
        %v622 = vsub.f32 %v614, %v621
        %v623 = vmul.f32 %v622, 1.442695
        %v624 = vpow.pop %v623
        %v625 = vsel %vm459, %v624, 0.0
        %626 = vadd.xlane.f32.xlu0 %v625
        %v627 = vpop.xlane.xlu0 %626
        %v628 = vrcp.pop %v627
        %v629 = vmul.f32 %v624, %v628
        %v630 = vpack.c.bf16 %v629, %v629
        %631 = vrot.lane.b32.xlu0 %v449, 56
        %v632 = vpop.permute.xlu0 %631
        %v634 = vsel %vm459, %v630, 0
        %v637 = vsel %vm523, %v632, 0
        %639 = vmatprep.subr.bf16.mxu0 0
        %640 = vmatpush1.bf16.msra.mxu0 0
        %641 = vmatprep.subr.bf16.mxu0 0
        %642 = vmatpush1.bf16.msra.mxu0 0
        %643 = vmatprep.subr.bf16.mxu0 0
        %644 = vmatpush1.bf16.msra.mxu0 0
        %645 = vmatprep.subr.bf16.mxu0 0
        %646 = vmatpush1.bf16.msra.mxu0 0
        %647 = vmatprep.subr.bf16.mxu0 0
        %648 = vmatpush1.bf16.msra.mxu0 0
        %649 = vmatprep.subr.bf16.mxu0 0
        %650 = vmatpush1.bf16.msra.mxu0 0
        %651 = vmatprep.subr.bf16.mxu0 0
        %652 = vmatpush1.bf16.msra.mxu0 0
        %653 = vmatprep.subr.bf16.mxu0 0
        %654 = vmatpush1.bf16.msra.mxu0 %v637
        %655 = vmatprep.subr.bf16.mxu0 0
        %656 = vmatpush2.bf16.msra.mxu0 0
        %657 = vmatprep.subr.bf16.mxu0 0
        %658 = vmatpush2.bf16.msra.mxu0 0
        %659 = vmatprep.subr.bf16.mxu0 0
        %660 = vmatpush2.bf16.msra.mxu0 0
        %661 = vmatprep.subr.bf16.mxu0 0
        %662 = vmatpush2.bf16.msra.mxu0 0
        %663 = vmatprep.subr.bf16.mxu0 0
        %664 = vmatpush2.bf16.msra.mxu0 0
        %665 = vmatprep.subr.bf16.mxu0 0
        %666 = vmatpush2.bf16.msra.mxu0 0
        %667 = vmatprep.subr.bf16.mxu0 0
        %668 = vmatpush2.bf16.msra.mxu0 0
        %669 = vmatprep.subr.bf16.mxu0 0
        %670 = vmatpush2.bf16.msra.mxu0 0
        %671 = vmatprep.mubr.bf16.mxu0 0
        %672 = vmatmul.mubr.bf16.gmra.mxu0 %v634
        %v673 = vpop.f32.mrf.mxu0
        %v674 = vadd.f32 0.0, %v673
        %v675 = vpop.f32.mrf.mxu0
        %v676 = vpop.f32.mrf.mxu0
        %v677 = vpop.f32.mrf.mxu0
        %678 = vdwg.mxu0
        %v679 = vpack.c.bf16 %v674, %v674
        %s680 = scalar_lea.vmem %s4, 4
        %v681 = vld [vmem:[%s680] sm:$0xf]
        %v683 = vsel %vm459, %v679, 0
        %v686 = vsel %vm523, %v681, 0
        %688 = vmatprep.subr.bf16.mxu0 0
        %689 = vmatpush1.bf16.msra.mxu0 0
        %690 = vmatprep.subr.bf16.mxu0 0
        %691 = vmatpush1.bf16.msra.mxu0 0
        %692 = vmatprep.subr.bf16.mxu0 0
        %693 = vmatpush1.bf16.msra.mxu0 0
        %694 = vmatprep.subr.bf16.mxu0 0
        %695 = vmatpush1.bf16.msra.mxu0 0
        %696 = vmatprep.subr.bf16.mxu0 0
        %697 = vmatpush1.bf16.msra.mxu0 0
        %698 = vmatprep.subr.bf16.mxu0 0
        %699 = vmatpush1.bf16.msra.mxu0 0
        %700 = vmatprep.subr.bf16.mxu0 0
        %701 = vmatpush1.bf16.msra.mxu0 0
        %702 = vmatprep.subr.bf16.mxu0 0
        %703 = vmatpush1.bf16.msra.mxu0 %v686
        %704 = vmatprep.subr.bf16.mxu0 0
        %705 = vmatpush2.bf16.msra.mxu0 0
        %706 = vmatprep.subr.bf16.mxu0 0
        %707 = vmatpush2.bf16.msra.mxu0 0
        %708 = vmatprep.subr.bf16.mxu0 0
        %709 = vmatpush2.bf16.msra.mxu0 0
        %710 = vmatprep.subr.bf16.mxu0 0
        %711 = vmatpush2.bf16.msra.mxu0 0
        %712 = vmatprep.subr.bf16.mxu0 0
        %713 = vmatpush2.bf16.msra.mxu0 0
        %714 = vmatprep.subr.bf16.mxu0 0
        %715 = vmatpush2.bf16.msra.mxu0 0
        %716 = vmatprep.subr.bf16.mxu0 0
        %717 = vmatpush2.bf16.msra.mxu0 0
        %718 = vmatprep.subr.bf16.mxu0 0
        %719 = vmatpush2.bf16.msra.mxu0 0
        %720 = vmatprep.mubr.bf16.mxu0 0
        %721 = vmatmul.mubr.bf16.gmra.mxu0 %v683
        %v722 = vpop.f32.mrf.mxu0
        %v723 = vadd.f32 0.0, %v722
        %v724 = vpop.f32.mrf.mxu0
        %v725 = vpop.f32.mrf.mxu0
        %v726 = vpop.f32.mrf.mxu0
        %727 = vdwg.mxu0
        %v729 = vsel %vm459, %v567, 0
        %v732 = vsel %vm523, %v568, 0
        %734 = vmatprep.subr.bf16.mxu0 0
        %735 = vmatpush1.bf16.msra.mxu0 0
        %736 = vmatprep.subr.bf16.mxu0 0
        %737 = vmatpush1.bf16.msra.mxu0 0
        %738 = vmatprep.subr.bf16.mxu0 0
        %739 = vmatpush1.bf16.msra.mxu0 0
        %740 = vmatprep.subr.bf16.mxu0 0
        %741 = vmatpush1.bf16.msra.mxu0 0
        %742 = vmatprep.subr.bf16.mxu0 0
        %743 = vmatpush1.bf16.msra.mxu0 0
        %744 = vmatprep.subr.bf16.mxu0 0
        %745 = vmatpush1.bf16.msra.mxu0 0
        %746 = vmatprep.subr.bf16.mxu0 0
        %747 = vmatpush1.bf16.msra.mxu0 0
        %748 = vmatprep.subr.bf16.mxu0 0
        %749 = vmatpush1.bf16.msra.mxu0 %v732
        %750 = vmatprep.subr.bf16.mxu0 0
        %751 = vmatpush2.bf16.msra.mxu0 0
        %752 = vmatprep.subr.bf16.mxu0 0
        %753 = vmatpush2.bf16.msra.mxu0 0
        %754 = vmatprep.subr.bf16.mxu0 0
        %755 = vmatpush2.bf16.msra.mxu0 0
        %756 = vmatprep.subr.bf16.mxu0 0
        %757 = vmatpush2.bf16.msra.mxu0 0
        %758 = vmatprep.subr.bf16.mxu0 0
        %759 = vmatpush2.bf16.msra.mxu0 0
        %760 = vmatprep.subr.bf16.mxu0 0
        %761 = vmatpush2.bf16.msra.mxu0 0
        %762 = vmatprep.subr.bf16.mxu0 0
        %763 = vmatpush2.bf16.msra.mxu0 0
        %764 = vmatprep.subr.bf16.mxu0 0
        %765 = vmatpush2.bf16.msra.mxu0 0
        %766 = vmatprep.mubr.bf16.mxu0 0
        %767 = vmatmul.mubr.bf16.gmra.mxu0 %v729
        %v768 = vpop.f32.mrf.mxu0
        %v769 = vadd.f32 %v723, %v768
        %v770 = vpop.f32.mrf.mxu0
        %v771 = vpop.f32.mrf.mxu0
        %v772 = vpop.f32.mrf.mxu0
        %773 = vdwg.mxu0
        %774 = vrot.lane.b32.xlu0 %v449, 112
        %v775 = vpop.permute.xlu0 %774
        %776 = vrot.lane.b32.xlu0 %v449, 80
        %v777 = vpop.permute.xlu0 %776
        %v779 = vsel %vm459, %v775, 0
        %v782 = vsel %vm459, %v777, 0
        %784 = vmatprep.subr.bf16.mxu0 0
        %785 = vmatpush1.bf16.xpose.msra.mxu0 0
        %786 = vmatprep.subr.bf16.mxu0 0
        %787 = vmatpush1.bf16.xpose.msra.mxu0 0
        %788 = vmatprep.subr.bf16.mxu0 0
        %789 = vmatpush1.bf16.xpose.msra.mxu0 0
        %790 = vmatprep.subr.bf16.mxu0 0
        %791 = vmatpush1.bf16.xpose.msra.mxu0 0
        %792 = vmatprep.subr.bf16.mxu0 0
        %793 = vmatpush1.bf16.xpose.msra.mxu0 0
        %794 = vmatprep.subr.bf16.mxu0 0
        %795 = vmatpush1.bf16.xpose.msra.mxu0 0
        %796 = vmatprep.subr.bf16.mxu0 0
        %797 = vmatpush1.bf16.xpose.msra.mxu0 0
        %798 = vmatprep.subr.bf16.mxu0 0
        %799 = vmatpush1.bf16.xpose.msra.mxu0 %v782
        %800 = vmatprep.subr.bf16.mxu0 0
        %801 = vmatpush2.bf16.xpose.msra.mxu0 0
        %802 = vmatprep.subr.bf16.mxu0 0
        %803 = vmatpush2.bf16.xpose.msra.mxu0 0
        %804 = vmatprep.subr.bf16.mxu0 0
        %805 = vmatpush2.bf16.xpose.msra.mxu0 0
        %806 = vmatprep.subr.bf16.mxu0 0
        %807 = vmatpush2.bf16.xpose.msra.mxu0 0
        %808 = vmatprep.subr.bf16.mxu0 0
        %809 = vmatpush2.bf16.xpose.msra.mxu0 0
        %810 = vmatprep.subr.bf16.mxu0 0
        %811 = vmatpush2.bf16.xpose.msra.mxu0 0
        %812 = vmatprep.subr.bf16.mxu0 0
        %813 = vmatpush2.bf16.xpose.msra.mxu0 0
        %814 = vmatprep.subr.bf16.mxu0 0
        %815 = vmatpush2.bf16.xpose.msra.mxu0 0
        %816 = vmatprep.mubr.bf16.mxu0 0
        %817 = vmatmul.mubr.bf16.gmra.mxu0 %v779
        %v818 = vpop.f32.mrf.mxu0
        %v819 = vadd.f32 %v454, %v818
        %v820 = vpop.f32.mrf.mxu0
        %v821 = vpop.f32.mrf.mxu0
        %v822 = vpop.f32.mrf.mxu0
        %823 = vdwg.mxu0
        %v824 = vsel %vm459, %v819, -inf
        %825 = vmax.xlane.f32.xlu0 %v824
        %v826 = vpop.xlane.xlu0 %825
        %v827 = vsub.f32 %v819, %v826
        %v828 = vmul.f32 %v827, 1.442695
        %v829 = vpow.pop %v828
        %v830 = vsel %vm459, %v829, 0.0
        %831 = vadd.xlane.f32.xlu0 %v830
        %v832 = vpop.xlane.xlu0 %831
        %v833 = vrcp.pop %v832
        %v834 = vmul.f32 %v829, %v833
        %v835 = vpack.c.bf16 %v834, %v834
        %836 = vrot.lane.b32.xlu0 %v449, 48
        %v837 = vpop.permute.xlu0 %836
        %v839 = vsel %vm459, %v835, 0
        %v842 = vsel %vm523, %v837, 0
        %844 = vmatprep.subr.bf16.mxu0 0
        %845 = vmatpush1.bf16.msra.mxu0 0
        %846 = vmatprep.subr.bf16.mxu0 0
        %847 = vmatpush1.bf16.msra.mxu0 0
        %848 = vmatprep.subr.bf16.mxu0 0
        %849 = vmatpush1.bf16.msra.mxu0 0
        %850 = vmatprep.subr.bf16.mxu0 0
        %851 = vmatpush1.bf16.msra.mxu0 0
        %852 = vmatprep.subr.bf16.mxu0 0
        %853 = vmatpush1.bf16.msra.mxu0 0
        %854 = vmatprep.subr.bf16.mxu0 0
        %855 = vmatpush1.bf16.msra.mxu0 0
        %856 = vmatprep.subr.bf16.mxu0 0
        %857 = vmatpush1.bf16.msra.mxu0 0
        %858 = vmatprep.subr.bf16.mxu0 0
        %859 = vmatpush1.bf16.msra.mxu0 %v842
        %860 = vmatprep.subr.bf16.mxu0 0
        %861 = vmatpush2.bf16.msra.mxu0 0
        %862 = vmatprep.subr.bf16.mxu0 0
        %863 = vmatpush2.bf16.msra.mxu0 0
        %864 = vmatprep.subr.bf16.mxu0 0
        %865 = vmatpush2.bf16.msra.mxu0 0
        %866 = vmatprep.subr.bf16.mxu0 0
        %867 = vmatpush2.bf16.msra.mxu0 0
        %868 = vmatprep.subr.bf16.mxu0 0
        %869 = vmatpush2.bf16.msra.mxu0 0
        %870 = vmatprep.subr.bf16.mxu0 0
        %871 = vmatpush2.bf16.msra.mxu0 0
        %872 = vmatprep.subr.bf16.mxu0 0
        %873 = vmatpush2.bf16.msra.mxu0 0
        %874 = vmatprep.subr.bf16.mxu0 0
        %875 = vmatpush2.bf16.msra.mxu0 0
        %876 = vmatprep.mubr.bf16.mxu0 0
        %877 = vmatmul.mubr.bf16.gmra.mxu0 %v839
        %v878 = vpop.f32.mrf.mxu0
        %v879 = vadd.f32 0.0, %v878
        %v880 = vpop.f32.mrf.mxu0
        %v881 = vpop.f32.mrf.mxu0
        %v882 = vpop.f32.mrf.mxu0
        %883 = vdwg.mxu0
        %v884 = vpack.c.bf16 %v879, %v879
        %s885 = scalar_lea.vmem %s4, 8
        %v886 = vld [vmem:[%s885] sm:$0xf]
        %v888 = vsel %vm459, %v884, 0
        %v891 = vsel %vm523, %v886, 0
        %893 = vmatprep.subr.bf16.mxu0 0
        %894 = vmatpush1.bf16.msra.mxu0 0
        %895 = vmatprep.subr.bf16.mxu0 0
        %896 = vmatpush1.bf16.msra.mxu0 0
        %897 = vmatprep.subr.bf16.mxu0 0
        %898 = vmatpush1.bf16.msra.mxu0 0
        %899 = vmatprep.subr.bf16.mxu0 0
        %900 = vmatpush1.bf16.msra.mxu0 0
        %901 = vmatprep.subr.bf16.mxu0 0
        %902 = vmatpush1.bf16.msra.mxu0 0
        %903 = vmatprep.subr.bf16.mxu0 0
        %904 = vmatpush1.bf16.msra.mxu0 0
        %905 = vmatprep.subr.bf16.mxu0 0
        %906 = vmatpush1.bf16.msra.mxu0 0
        %907 = vmatprep.subr.bf16.mxu0 0
        %908 = vmatpush1.bf16.msra.mxu0 %v891
        %909 = vmatprep.subr.bf16.mxu0 0
        %910 = vmatpush2.bf16.msra.mxu0 0
        %911 = vmatprep.subr.bf16.mxu0 0
        %912 = vmatpush2.bf16.msra.mxu0 0
        %913 = vmatprep.subr.bf16.mxu0 0
        %914 = vmatpush2.bf16.msra.mxu0 0
        %915 = vmatprep.subr.bf16.mxu0 0
        %916 = vmatpush2.bf16.msra.mxu0 0
        %917 = vmatprep.subr.bf16.mxu0 0
        %918 = vmatpush2.bf16.msra.mxu0 0
        %919 = vmatprep.subr.bf16.mxu0 0
        %920 = vmatpush2.bf16.msra.mxu0 0
        %921 = vmatprep.subr.bf16.mxu0 0
        %922 = vmatpush2.bf16.msra.mxu0 0
        %923 = vmatprep.subr.bf16.mxu0 0
        %924 = vmatpush2.bf16.msra.mxu0 0
        %925 = vmatprep.mubr.bf16.mxu0 0
        %926 = vmatmul.mubr.bf16.gmra.mxu0 %v888
        %v927 = vpop.f32.mrf.mxu0
        %v928 = vadd.f32 0.0, %v927
        %v929 = vpop.f32.mrf.mxu0
        %v930 = vpop.f32.mrf.mxu0
        %v931 = vpop.f32.mrf.mxu0
        %932 = vdwg.mxu0
        %v933 = vadd.f32 %v769, %v928
        %934 = vrot.lane.b32.xlu0 %v449, 104
        %v935 = vpop.permute.xlu0 %934
        %936 = vrot.lane.b32.xlu0 %v449, 72
        %v937 = vpop.permute.xlu0 %936
        %v939 = vsel %vm459, %v935, 0
        %v942 = vsel %vm459, %v937, 0
        %944 = vmatprep.subr.bf16.mxu0 0
        %945 = vmatpush1.bf16.xpose.msra.mxu0 0
        %946 = vmatprep.subr.bf16.mxu0 0
        %947 = vmatpush1.bf16.xpose.msra.mxu0 0
        %948 = vmatprep.subr.bf16.mxu0 0
        %949 = vmatpush1.bf16.xpose.msra.mxu0 0
        %950 = vmatprep.subr.bf16.mxu0 0
        %951 = vmatpush1.bf16.xpose.msra.mxu0 0
        %952 = vmatprep.subr.bf16.mxu0 0
        %953 = vmatpush1.bf16.xpose.msra.mxu0 0
        %954 = vmatprep.subr.bf16.mxu0 0
        %955 = vmatpush1.bf16.xpose.msra.mxu0 0
        %956 = vmatprep.subr.bf16.mxu0 0
        %957 = vmatpush1.bf16.xpose.msra.mxu0 0
        %958 = vmatprep.subr.bf16.mxu0 0
        %959 = vmatpush1.bf16.xpose.msra.mxu0 %v942
        %960 = vmatprep.subr.bf16.mxu0 0
        %961 = vmatpush2.bf16.xpose.msra.mxu0 0
        %962 = vmatprep.subr.bf16.mxu0 0
        %963 = vmatpush2.bf16.xpose.msra.mxu0 0
        %964 = vmatprep.subr.bf16.mxu0 0
        %965 = vmatpush2.bf16.xpose.msra.mxu0 0
        %966 = vmatprep.subr.bf16.mxu0 0
        %967 = vmatpush2.bf16.xpose.msra.mxu0 0
        %968 = vmatprep.subr.bf16.mxu0 0
        %969 = vmatpush2.bf16.xpose.msra.mxu0 0
        %970 = vmatprep.subr.bf16.mxu0 0
        %971 = vmatpush2.bf16.xpose.msra.mxu0 0
        %972 = vmatprep.subr.bf16.mxu0 0
        %973 = vmatpush2.bf16.xpose.msra.mxu0 0
        %974 = vmatprep.subr.bf16.mxu0 0
        %975 = vmatpush2.bf16.xpose.msra.mxu0 0
        %976 = vmatprep.mubr.bf16.mxu0 0
        %977 = vmatmul.mubr.bf16.gmra.mxu0 %v939
        %v978 = vpop.f32.mrf.mxu0
        %v979 = vadd.f32 %v454, %v978
        %v980 = vpop.f32.mrf.mxu0
        %v981 = vpop.f32.mrf.mxu0
        %v982 = vpop.f32.mrf.mxu0
        %983 = vdwg.mxu0
        %v984 = vsel %vm459, %v979, -inf
        %985 = vmax.xlane.f32.xlu0 %v984
        %v986 = vpop.xlane.xlu0 %985
        %v987 = vsub.f32 %v979, %v986
        %v988 = vmul.f32 %v987, 1.442695
        %v989 = vpow.pop %v988
        %v990 = vsel %vm459, %v989, 0.0
        %991 = vadd.xlane.f32.xlu0 %v990
        %v992 = vpop.xlane.xlu0 %991
        %v993 = vrcp.pop %v992
        %v994 = vmul.f32 %v989, %v993
        %v995 = vpack.c.bf16 %v994, %v994
        %996 = vrot.lane.b32.xlu0 %v449, 40
        %v997 = vpop.permute.xlu0 %996
        %v999 = vsel %vm459, %v995, 0
        %v1002 = vsel %vm523, %v997, 0
        %1004 = vmatprep.subr.bf16.mxu0 0
        %1005 = vmatpush1.bf16.msra.mxu0 0
        %1006 = vmatprep.subr.bf16.mxu0 0
        %1007 = vmatpush1.bf16.msra.mxu0 0
        %1008 = vmatprep.subr.bf16.mxu0 0
        %1009 = vmatpush1.bf16.msra.mxu0 0
        %1010 = vmatprep.subr.bf16.mxu0 0
        %1011 = vmatpush1.bf16.msra.mxu0 0
        %1012 = vmatprep.subr.bf16.mxu0 0
        %1013 = vmatpush1.bf16.msra.mxu0 0
        %1014 = vmatprep.subr.bf16.mxu0 0
        %1015 = vmatpush1.bf16.msra.mxu0 0
        %1016 = vmatprep.subr.bf16.mxu0 0
        %1017 = vmatpush1.bf16.msra.mxu0 0
        %1018 = vmatprep.subr.bf16.mxu0 0
        %1019 = vmatpush1.bf16.msra.mxu0 %v1002
        %1020 = vmatprep.subr.bf16.mxu0 0
        %1021 = vmatpush2.bf16.msra.mxu0 0
        %1022 = vmatprep.subr.bf16.mxu0 0
        %1023 = vmatpush2.bf16.msra.mxu0 0
        %1024 = vmatprep.subr.bf16.mxu0 0
        %1025 = vmatpush2.bf16.msra.mxu0 0
        %1026 = vmatprep.subr.bf16.mxu0 0
        %1027 = vmatpush2.bf16.msra.mxu0 0
        %1028 = vmatprep.subr.bf16.mxu0 0
        %1029 = vmatpush2.bf16.msra.mxu0 0
        %1030 = vmatprep.subr.bf16.mxu0 0
        %1031 = vmatpush2.bf16.msra.mxu0 0
        %1032 = vmatprep.subr.bf16.mxu0 0
        %1033 = vmatpush2.bf16.msra.mxu0 0
        %1034 = vmatprep.subr.bf16.mxu0 0
        %1035 = vmatpush2.bf16.msra.mxu0 0
        %1036 = vmatprep.mubr.bf16.mxu0 0
        %1037 = vmatmul.mubr.bf16.gmra.mxu0 %v999
        %v1038 = vpop.f32.mrf.mxu0
        %v1039 = vadd.f32 0.0, %v1038
        %v1040 = vpop.f32.mrf.mxu0
        %v1041 = vpop.f32.mrf.mxu0
        %v1042 = vpop.f32.mrf.mxu0
        %1043 = vdwg.mxu0
        %v1044 = vpack.c.bf16 %v1039, %v1039
        %s1045 = scalar_lea.vmem %s4, 12
        %v1046 = vld [vmem:[%s1045] sm:$0xf]
        %v1048 = vsel %vm459, %v1044, 0
        %v1051 = vsel %vm523, %v1046, 0
        %1053 = vmatprep.subr.bf16.mxu0 0
        %1054 = vmatpush1.bf16.msra.mxu0 0
        %1055 = vmatprep.subr.bf16.mxu0 0
        %1056 = vmatpush1.bf16.msra.mxu0 0
        %1057 = vmatprep.subr.bf16.mxu0 0
        %1058 = vmatpush1.bf16.msra.mxu0 0
        %1059 = vmatprep.subr.bf16.mxu0 0
        %1060 = vmatpush1.bf16.msra.mxu0 0
        %1061 = vmatprep.subr.bf16.mxu0 0
        %1062 = vmatpush1.bf16.msra.mxu0 0
        %1063 = vmatprep.subr.bf16.mxu0 0
        %1064 = vmatpush1.bf16.msra.mxu0 0
        %1065 = vmatprep.subr.bf16.mxu0 0
        %1066 = vmatpush1.bf16.msra.mxu0 0
        %1067 = vmatprep.subr.bf16.mxu0 0
        %1068 = vmatpush1.bf16.msra.mxu0 %v1051
        %1069 = vmatprep.subr.bf16.mxu0 0
        %1070 = vmatpush2.bf16.msra.mxu0 0
        %1071 = vmatprep.subr.bf16.mxu0 0
        %1072 = vmatpush2.bf16.msra.mxu0 0
        %1073 = vmatprep.subr.bf16.mxu0 0
        %1074 = vmatpush2.bf16.msra.mxu0 0
        %1075 = vmatprep.subr.bf16.mxu0 0
        %1076 = vmatpush2.bf16.msra.mxu0 0
        %1077 = vmatprep.subr.bf16.mxu0 0
        %1078 = vmatpush2.bf16.msra.mxu0 0
        %1079 = vmatprep.subr.bf16.mxu0 0
        %1080 = vmatpush2.bf16.msra.mxu0 0
        %1081 = vmatprep.subr.bf16.mxu0 0
        %1082 = vmatpush2.bf16.msra.mxu0 0
        %1083 = vmatprep.subr.bf16.mxu0 0
        %1084 = vmatpush2.bf16.msra.mxu0 0
        %1085 = vmatprep.mubr.bf16.mxu0 0
        %1086 = vmatmul.mubr.bf16.gmra.mxu0 %v1048
        %v1087 = vpop.f32.mrf.mxu0
        %v1088 = vadd.f32 0.0, %v1087
        %v1089 = vpop.f32.mrf.mxu0
        %v1090 = vpop.f32.mrf.mxu0
        %v1091 = vpop.f32.mrf.mxu0
        %1092 = vdwg.mxu0
        %v1093 = vadd.f32 %v933, %v1088
        %v1094 = vlaneseq
        %v1095 = vshrl.u32 %v1094, 7
        %v1096 = vsub.s32 0, %v1095
        %v1097 = vrot.slane %v380, %v1096
        %v1098 = vadd.f32 %v1093, %v1097
        %v1099 = vadd.f32 %v378, %v1098
        %v1100 = vsel %vm405, %v1099, 0.0
        %1101 = vadd.xlane.f32.xlu0 %v1100
        %v1102 = vpop.xlane.xlu0 %1101
        %v1103 = vrcp.pop 32.0
        %v1104 = vmul.f32 %v1102, %v1103
        %v1105 = vsub.f32 %v1099, %v1104
        %v1106 = vmul.f32 %v1105, %v1105
        %v1107 = vsel %vm405, %v1106, 0.0
        %1108 = vadd.xlane.f32.xlu0 %v1107
        %v1109 = vpop.xlane.xlu0 %1108
        %v1110 = vmul.f32 %v1109, %v1103
        %v1111 = vadd.f32 %v1110, 1e-05
        %v1112 = vrsqrt.pop %v1111
        %v1113 = vmul.f32 %v1105, %v1112
        %v1114 = vlaneseq
        %v1115 = vshrl.u32 %v1114, 7
        %v1116 = vsub.s32 2, %v1115
        %v1117 = vrot.slane %v380, %v1116
        %v1118 = vmul.f32 %v1113, %v1117
        %v1119 = vlaneseq
        %v1120 = vshrl.u32 %v1119, 7
        %v1121 = vsub.s32 3, %v1120
        %v1122 = vrot.slane %v380, %v1121
        %v1123 = vadd.f32 %v1118, %v1122
        %v1124 = vpack.c.bf16 %v1123, %v1123
        %v1125 = vld [vmem:[#allocation5] sm:$0xf]
        %v1126 = vld [vmem:[#allocation5 + $0x4] sm:$0xf]
        %v1127 = vld [vmem:[#allocation5 + $0x8] sm:$0xf]
        %v1128 = vld [vmem:[#allocation5 + $0xc] sm:$0xf]
        %v1129 = vld [vmem:[%s6] sm:$0x1]
        %v1131 = vlaneseq
        %v1132 = vshrl.u32 %v1131, 7
        %v1133 = vsub.s32 0, %v1132
        %v1134 = vrot.slane %v1129, %v1133
        %v1140 = vunpack.c.l.b16 %v1125
        %v1141 = vunpack.c.l.b16 %v1126
        %v1142 = vunpack.c.l.b16 %v1127
        %v1143 = vunpack.c.l.b16 %v1128
        %v1144 = vpack.c.b16 %v1141, %v1140
        %v1145 = vpack.c.b16 %v1143, %v1142
        %v1149 = vsel %vm405, %v1124, 0
        %1151 = vmatprep.subr.bf16.mxu0 0
        %1152 = vmatpush1.bf16.msra.mxu0 0
        %1153 = vmatprep.subr.bf16.mxu0 0
        %1154 = vmatpush1.bf16.msra.mxu0 0
        %1155 = vmatprep.subr.bf16.mxu0 0
        %1156 = vmatpush1.bf16.msra.mxu0 0
        %1157 = vmatprep.subr.bf16.mxu0 0
        %1158 = vmatpush1.bf16.msra.mxu0 0
        %1159 = vmatprep.subr.bf16.mxu0 0
        %1160 = vmatpush1.bf16.msra.mxu0 0
        %1161 = vmatprep.subr.bf16.mxu0 0
        %1162 = vmatpush1.bf16.msra.mxu0 0
        %1163 = vmatprep.subr.bf16.mxu0 0
        %1164 = vmatpush1.bf16.msra.mxu0 %v1145
        %1165 = vmatprep.subr.bf16.mxu0 0
        %1166 = vmatpush1.bf16.msra.mxu0 %v1144
        %1167 = vmatprep.subr.bf16.mxu0 0
        %1168 = vmatpush2.bf16.msra.mxu0 0
        %1169 = vmatprep.subr.bf16.mxu0 0
        %1170 = vmatpush2.bf16.msra.mxu0 0
        %1171 = vmatprep.subr.bf16.mxu0 0
        %1172 = vmatpush2.bf16.msra.mxu0 0
        %1173 = vmatprep.subr.bf16.mxu0 0
        %1174 = vmatpush2.bf16.msra.mxu0 0
        %1175 = vmatprep.subr.bf16.mxu0 0
        %1176 = vmatpush2.bf16.msra.mxu0 0
        %1177 = vmatprep.subr.bf16.mxu0 0
        %1178 = vmatpush2.bf16.msra.mxu0 0
        %1179 = vmatprep.subr.bf16.mxu0 0
        %1180 = vmatpush2.bf16.msra.mxu0 0
        %1181 = vmatprep.subr.bf16.mxu0 0
        %1182 = vmatpush2.bf16.msra.mxu0 0
        %1183 = vmatprep.mubr.bf16.mxu0 0
        %1184 = vmatmul.mubr.bf16.gmra.mxu0 %v1149
        %v1185 = vpop.f32.mrf.mxu0
        %v1186 = vadd.f32 %v1134, %v1185
        %v1187 = vpop.f32.mrf.mxu0
        %v1188 = vpop.f32.mrf.mxu0
        %v1189 = vpop.f32.mrf.mxu0
        %1190 = vdwg.mxu0
        %v1191 = vmax.f32 %v1186, 0.0
        %v1192 = vpack.c.bf16 %v1191, %v1191
        %v1193 = vld [vmem:[%s7] sm:$0xf]
        %v1194 = vld [vmem:[%s7 + $0x4] sm:$0xf]
        %v1195 = vld [vmem:[%s7 + $0x8] sm:$0xf]
        %v1196 = vld [vmem:[%s7 + $0xc] sm:$0xf]
        %v1197 = vld [vmem:[%s7 + $0x10] sm:$0xf]
        %v1198 = vld [vmem:[%s7 + $0x14] sm:$0xf]
        %v1199 = vld [vmem:[%s7 + $0x18] sm:$0xf]
        %v1200 = vld [vmem:[%s7 + $0x1c] sm:$0xf]
        %v1201 = vlaneseq
        %v1202 = vshrl.u32 %v1201, 7
        %v1203 = vsub.s32 1, %v1202
        %v1204 = vrot.slane %v380, %v1203
        %v1213 = vunpack.c.l.b16 %v1193
        %v1214 = vunpack.c.l.b16 %v1194
        %v1215 = vunpack.c.l.b16 %v1195
        %v1216 = vunpack.c.l.b16 %v1196
        %v1217 = vunpack.c.l.b16 %v1197
        %v1218 = vunpack.c.l.b16 %v1198
        %v1219 = vunpack.c.l.b16 %v1199
        %v1220 = vunpack.c.l.b16 %v1200
        %v1221 = vpack.c.b16 %v1214, %v1213
        %v1222 = vpack.c.b16 %v1216, %v1215
        %v1223 = vpack.c.b16 %v1218, %v1217
        %v1224 = vpack.c.b16 %v1220, %v1219
        %vm1229 = vcmask 523264
        %v1231 = vsel %vm1229, %v1192, 0
        %1233 = vmatprep.subr.bf16.mxu0 0
        %1234 = vmatpush1.bf16.msra.mxu0 0
        %1235 = vmatprep.subr.bf16.mxu0 0
        %1236 = vmatpush1.bf16.msra.mxu0 0
        %1237 = vmatprep.subr.bf16.mxu0 0
        %1238 = vmatpush1.bf16.msra.mxu0 0
        %1239 = vmatprep.subr.bf16.mxu0 0
        %1240 = vmatpush1.bf16.msra.mxu0 0
        %1241 = vmatprep.subr.bf16.mxu0 0
        %1242 = vmatpush1.bf16.msra.mxu0 %v1224
        %1243 = vmatprep.subr.bf16.mxu0 0
        %1244 = vmatpush1.bf16.msra.mxu0 %v1223
        %1245 = vmatprep.subr.bf16.mxu0 0
        %1246 = vmatpush1.bf16.msra.mxu0 %v1222
        %1247 = vmatprep.subr.bf16.mxu0 0
        %1248 = vmatpush1.bf16.msra.mxu0 %v1221
        %1249 = vmatprep.subr.bf16.mxu0 0
        %1250 = vmatpush2.bf16.msra.mxu0 0
        %1251 = vmatprep.subr.bf16.mxu0 0
        %1252 = vmatpush2.bf16.msra.mxu0 0
        %1253 = vmatprep.subr.bf16.mxu0 0
        %1254 = vmatpush2.bf16.msra.mxu0 0
        %1255 = vmatprep.subr.bf16.mxu0 0
        %1256 = vmatpush2.bf16.msra.mxu0 0
        %1257 = vmatprep.subr.bf16.mxu0 0
        %1258 = vmatpush2.bf16.msra.mxu0 0
        %1259 = vmatprep.subr.bf16.mxu0 0
        %1260 = vmatpush2.bf16.msra.mxu0 0
        %1261 = vmatprep.subr.bf16.mxu0 0
        %1262 = vmatpush2.bf16.msra.mxu0 0
        %1263 = vmatprep.subr.bf16.mxu0 0
        %1264 = vmatpush2.bf16.msra.mxu0 0
        %1265 = vmatprep.mubr.bf16.mxu0 0
        %1266 = vmatmul.mubr.bf16.gmra.mxu0 %v1231
        %v1267 = vpop.f32.mrf.mxu0
        %v1268 = vadd.f32 %v1204, %v1267
        %v1269 = vpop.f32.mrf.mxu0
        %v1270 = vpop.f32.mrf.mxu0
        %v1271 = vpop.f32.mrf.mxu0
        %1272 = vdwg.mxu0
        %v1273 = vadd.f32 %v1123, %v1268
        %v1274 = vsel %vm405, %v1273, 0.0
        %1275 = vadd.xlane.f32.xlu0 %v1274
        %v1276 = vpop.xlane.xlu0 %1275
        %v1277 = vmul.f32 %v1276, %v1103
        %v1278 = vsub.f32 %v1273, %v1277
        %v1279 = vmul.f32 %v1278, %v1278
        %v1280 = vsel %vm405, %v1279, 0.0
        %1281 = vadd.xlane.f32.xlu0 %v1280
        %v1282 = vpop.xlane.xlu0 %1281
        %v1283 = vmul.f32 %v1282, %v1103
        %v1284 = vadd.f32 %v1283, 1e-05
        %v1285 = vrsqrt.pop %v1284
        %v1286 = vmul.f32 %v1278, %v1285
        %v1287 = vlaneseq
        %v1288 = vshrl.u32 %v1287, 7
        %v1289 = vsub.s32 4, %v1288
        %v1290 = vrot.slane %v380, %v1289
        %v1291 = vmul.f32 %v1286, %v1290
        %v1292 = vlaneseq
        %v1293 = vshrl.u32 %v1292, 7
        %v1294 = vsub.s32 5, %v1293
        %v1295 = vrot.slane %v380, %v1294
        %v1296 = vadd.f32 %v1291, %v1295
        %1297 = vst.msk [vmem:[%s372] sm:$0xff] %vm405, %v1296
        %s1298 = sand.u32 %s234, 1
        %s1299 = scalar_lea.sflag [#allocation4], %s1298
        %s1300 = sand.u32 %s234, 1
        %s1301 = smul.addr %s1300, 8
        %s1302 = scalar_lea.vmem [#allocation7], %s1301
        // Predicated region
        $region65: #{tpu_custom_call.1} parent=55 // pred_check
          %p1303 = pneg %p244
        $region66: #{tpu_custom_call.1} parent=55 // pred_check_branch
          %1305 = sbr.rel (%p1303) target = $region68
        $region67: #{tpu_custom_call.1} parent=55 // pred_region
          %s1307 = ssub.s32 128, 128
          %1308 = vsyncadd %s1299, %s1307
          %s1309 = smul.addr %s27, 128
          %s1310 = scalar_lea.hbm %s9, %s1309
          %s1312 = sshll.u32 %s1302, 4
          %s1313 = int_to_ptr.vmem [resolvable:$true] %s1312
          %1315 = dma.vmem_to_hbm [thread:$0]  %s1313, 128, %s1310, %s1299
        $region68: #{tpu_custom_call.1} parent=55 // pred_fallthru
          _
      $region56: #{tpu_custom_call.1} parent=5 // pred_fallthru
        _
      %p1316 = scmp.le.s32.totalorder 2, %s22
      // Predicated region
      $region69: #{tpu_custom_call.1} parent=5 // pred_check
        %p1317 = pneg %p1316
      $region70: #{tpu_custom_call.1} parent=5 // pred_check_branch
        %1319 = sbr.rel (%p1317) target = $region72
      $region71: #{tpu_custom_call.1} parent=5 // pred_region
        %s1320 = ssub.s32 %s22, 2
        // Predicated region
        $region73: #{tpu_custom_call.1} parent=71 // pred_check
          %p1321 = pneg %p250
        $region74: #{tpu_custom_call.1} parent=71 // pred_check_branch
          %1323 = sbr.rel (%p1321) target = $region76
        $region75: #{tpu_custom_call.1} parent=71 // pred_region
          %s1324 = sand.u32 %s235, 1
          %s1325 = scalar_lea.sflag [#allocation4], %s1324
          %s1326 = sand.u32 %s235, 1
          %s1327 = smul.addr %s1326, 8
          %s1328 = scalar_lea.vmem [#allocation7], %s1327
          %1329 = dma.done %s1325, 128
        $region76: #{tpu_custom_call.1} parent=71 // pred_fallthru
          _
      $region72: #{tpu_custom_call.1} parent=5 // pred_fallthru
        _
    $region6: #{tpu_custom_call.1} parent=1 // loop_footer
      %s26 = sadd.s32 1, %s22
    $region7: #{tpu_custom_call.1} parent=1 // loop_footer_branch
      %21 = sbr.rel target = $region3
    $region8: #{tpu_custom_call.1} parent=1 // loop_exit
      _
    %1330 = vsyncpa [#allocation3], 1
    %s1331 = scalar_lea.sflag [#allocation3], 1
    %1332 = vsyncpa %s1331, 1
    %1333 = vsyncpa [#allocation6], 1
    %1334 = vsyncpa [#allocation4], 1
    %s1335 = scalar_lea.sflag [#allocation4], 1
    %1336 = vsyncpa %s1335, 1

</llo_original>
